<compile_context>
chip_gen: v7x
topology: tpu7x:2x2x1
jax: 0.10.0
libtpu: 0.0.40
codegen_flags: <defaults>
</compile_context>

<pallas_src>
import functools

import jax
import jax.numpy as jnp
from jax import lax
from jax.experimental import pallas as pl
from jax.experimental.pallas import tpu as pltpu


# ----------------------------------------------------------------------------
# Pallas kernel: dual unmasked Grams  G0 = Z^T Z, G1 = Z_bar^T Z_bar
# ----------------------------------------------------------------------------
def _dual_gram_kernel(z_ref, zb_ref, g_ref, acc0_ref, acc1_ref, *,
                      compute_dtype):
    k = pl.program_id(1)  # sample-chunk reduction step within this shard

    @pl.when(k == 0)
    def _():
        acc0_ref[...] = jnp.zeros_like(acc0_ref)
        acc1_ref[...] = jnp.zeros_like(acc1_ref)

    z = z_ref[...]                                  # (tn, D)
    zb = zb_ref[...]                                # (tn, D)
    if compute_dtype is not None:
        z = z.astype(compute_dtype)
        zb = zb.astype(compute_dtype)

    # Contract axis 0 of both operands: (tn, D) x (tn, D) -> (D, D).
    # No explicit transpose (avoids per-step XLU work), f32 MXU accumulation.
    dn = (((0,), (0,)), ((), ()))
    acc0_ref[...] += lax.dot_general(z, z, dimension_numbers=dn,
                                     preferred_element_type=jnp.float32)
    acc1_ref[...] += lax.dot_general(zb, zb, dimension_numbers=dn,
                                     preferred_element_type=jnp.float32)

    @pl.when(k == pl.num_programs(1) - 1)
    def _():
        g_ref[0, 0, :, :] = acc0_ref[...].astype(g_ref.dtype)
        g_ref[0, 1, :, :] = acc1_ref[...].astype(g_ref.dtype)


def _round_up(x, m):
    return ((x + m - 1) // m) * m


def dual_grams(z, z_bar, *, compute_dtype=None, num_shards=2, max_tile=2048):
    """z, z_bar: (N, D) float32 -> (2, D, D) float32 Grams [Z^T Z, Zb^T Zb]."""
    n, d = z.shape

    # Large sample tile (multiple of 8 sublanes); pad N with zero rows (exact
    # for a Gram) instead of shrinking the tile.
    per_shard = -(-n // num_shards)
    tn = min(max_tile, _round_up(per_shard, 8))
    padded_n = _round_up(n, num_shards * tn)
    if padded_n != n:
        pad = padded_n - n
        z = jnp.pad(z, ((0, pad), (0, 0)))
        z_bar = jnp.pad(z_bar, ((0, pad), (0, 0)))
    k_steps = padded_n // (num_shards * tn)

    kernel = functools.partial(_dual_gram_kernel, compute_dtype=compute_dtype)

    # NOTE: if profiling shows exposed DMA at very large N, a deeper input
    # pipeline (pipeline_mode=pl.Buffered(3)) on the two sample streams is a
    # cheap follow-up; default double-buffering is sufficient at these sizes.
    partial_grams = pl.pallas_call(
        kernel,
        out_shape=jax.ShapeDtypeStruct((num_shards, 2, d, d), jnp.float32),
        grid_spec=pltpu.PrefetchScalarGridSpec(
            num_scalar_prefetch=0,
            grid=(num_shards, k_steps),
            in_specs=[
                pl.BlockSpec((tn, d), lambda s, k: (s * k_steps + k, 0)),
                pl.BlockSpec((tn, d), lambda s, k: (s * k_steps + k, 0)),
            ],
            out_specs=pl.BlockSpec((1, 2, d, d), lambda s, k: (s, 0, 0, 0)),
            scratch_shapes=[pltpu.VMEM((d, d), jnp.float32),
                            pltpu.VMEM((d, d), jnp.float32)],
        ),
        compiler_params=pltpu.CompilerParams(
            dimension_semantics=("parallel", "arbitrary")),
    )(z, z_bar)

    return jnp.sum(partial_grams, axis=0)           # (2, D, D)


# ----------------------------------------------------------------------------
# MCRGANloss glue (deltaR / forward) for mode 0, mirroring the PyTorch module
# ----------------------------------------------------------------------------
def _delta_r_mode0(z, z_bar, eps, compute_dtype):
    """deltaR(concat(Z, Z_bar), [0...0, 1...1], 2) without the concat."""
    z = z.astype(jnp.float32)
    z_bar = z_bar.astype(jnp.float32)
    n_half, d = z.shape
    n = 2 * n_half

    grams = dual_grams(z, z_bar, compute_dtype=compute_dtype)   # (2, D, D)
    gram_all = grams[0] + grams[1]                              # X^T X

    eye = jnp.eye(d, dtype=jnp.float32)

    # compute_discrimn_loss(X.T): logdet(I + d/(n*eps) * X^T X) / 2
    discrimn = 0.5 * jnp.linalg.slogdet(eye + (d / (n * eps)) * gram_all)[1]

    # compute_compress_loss(X.T, Pi) with Pi = the concat boundary one-hot
    tr_pi = jnp.full((2,), float(n_half), jnp.float32) + 1e-8   # (2,)
    inner_scale = d / (tr_pi * eps)                             # (2,)
    compress_logdets = jnp.linalg.slogdet(
        eye[None, :, :] + inner_scale[:, None, None] * grams)[1]  # (2,)
    scalars = tr_pi / (2.0 * n)                                 # (2,)

    compress_term = jnp.sum(scalars * compress_logdets)
    total_loss = discrimn - compress_term
    return -total_loss, (discrimn, compress_term, compress_logdets, scalars)


@functools.partial(jax.jit, static_argnames=("num_classes", "mode", "use_bf16"))
def mcr_gan_loss_forward(Z, Z_bar, real_label, ith_inner_loop=0,
                         num_inner_loop=1, gam1=1.0, gam2=1.0, gam3=1.0,
                         eps=0.5, num_classes=1000, mode=0, use_bf16=False):
    if mode != 0:
        raise NotImplementedError("only train_mode == 0 is implemented")
    del real_label, ith_inner_loop, num_inner_loop   # unused in mode 0
    del gam1, gam2, gam3, num_classes                # unused in mode 0
    compute_dtype = jnp.bfloat16 if use_bf16 else None
    err_d, empi = _delta_r_mode0(Z, Z_bar, eps, compute_dtype)
    return err_d, empi


# ----------------------------------------------------------------------------
# Pure-JAX reference (mirrors the PyTorch math directly) for validation
# ----------------------------------------------------------------------------
def _ref_forward(Z, Z_bar, real_label, eps=0.5):
    x = jnp.concatenate([Z, Z_bar], axis=0).astype(jnp.float32)
    y = jnp.concatenate(
        [jnp.zeros_like(real_label), jnp.ones_like(real_label)], axis=0)
    pi = jax.nn.one_hot(y, 2, dtype=jnp.float32)
    n, d = x.shape
    zt = x.T                                                      # (D, N)
    eye = jnp.eye(d, dtype=jnp.float32)
    discrimn = 0.5 * jnp.linalg.slogdet(eye + (d / (n * eps)) * zt @ zt.T)[1]
    compress_term = 0.0
    for j in range(2):
        m = pi[:, j]
        zj = zt * m[None, :]
        tr = jnp.sum(m) + 1e-8
        ld = jnp.linalg.slogdet(eye + (d / (tr * eps)) * zj @ zj.T)[1]
        compress_term = compress_term + (tr / (2.0 * n)) * ld
    return -(discrimn - compress_term)


if __name__ == "__main__":
    key = jax.random.PRNGKey(0)
    k1, k2, k3 = jax.random.split(key, 3)

    n, d = 64, 32                                # samples per side, feature dim
    Z = jax.random.normal(k1, (n, d), dtype=jnp.float32)
    Z_bar = jax.random.normal(k2, (n, d), dtype=jnp.float32)
    real_label = jax.random.randint(k3, (n,), 0, 1000, dtype=jnp.int32)

    ref = jax.block_until_ready(_ref_forward(Z, Z_bar, real_label))

    # f32 MXU-operand path: must match the reference tightly.
    err_d, empi = mcr_gan_loss_forward(Z, Z_bar, real_label)
    err_d = jax.block_until_ready(err_d)
    jax.block_until_ready(empi)
    assert err_d.shape == ()
    assert jnp.allclose(err_d, ref, rtol=1e-4, atol=1e-4), (err_d, ref)

    # bf16 MXU-operand path (f32 accumulation): loose tolerance because the
    # scaled Grams amplify operand rounding before the logdet.
    err_bf16, empi_bf16 = mcr_gan_loss_forward(Z, Z_bar, real_label,
                                               use_bf16=True)
    err_bf16 = jax.block_until_ready(err_bf16)
    jax.block_until_ready(empi_bf16)
    assert bool(jnp.isfinite(err_bf16)), err_bf16
    assert abs(float(err_bf16) - float(ref)) <= 1.0 + 0.05 * abs(float(ref)), (
        err_bf16, ref)

    print("KERNEL_OK")
</pallas_src>

<mosaic_0001>
module attributes {stable_mosaic.version = 11 : i64} {
  func.func @_dual_gram_kernel(%arg0: i32, %arg1: i32, %arg2: memref<32x32xf32, #tpu.memory_space<vmem>>, %arg3: memref<32x32xf32, #tpu.memory_space<vmem>>, %arg4: memref<1x2x32x32xf32, #tpu.memory_space<vmem>>, %arg5: memref<32x32xf32, #tpu.memory_space<vmem>>, %arg6: memref<32x32xf32, #tpu.memory_space<vmem>>) attributes {dimension_semantics = [#tpu.dimension_semantics<parallel>, #tpu.dimension_semantics<arbitrary>], iteration_bounds = array<i64: 2, 1>, scalar_prefetch = 0 : i64, scratch_operands = 2 : i64, tpu.core_type = #tpu.core_type<tc>, window_params = [{transform_indices = @transform_0, window_bounds = array<i64: 32, 32>}, {transform_indices = @transform_1, window_bounds = array<i64: 32, 32>}, {transform_indices = @transform_2, window_bounds = array<i64: 1, 2, 32, 32>}]} {
    %c0_i32 = arith.constant 0 : i32
    %0 = arith.cmpi eq, %arg1, %c0_i32 : i32
    %1 = arith.extui %0 : i1 to i32
    %c0_i32_0 = arith.constant 0 : i32
    %2 = arith.cmpi ne, %1, %c0_i32_0 : i32
    scf.if %2 {
      %cst_15 = arith.constant 0.000000e+00 : f32
      %16 = vector.broadcast %cst_15 : f32 to vector<32x32xf32>
      %c0_16 = arith.constant 0 : index
      %c0_17 = arith.constant 0 : index
      %17 = vector.load %arg5[%c0_16, %c0_17] : memref<32x32xf32, #tpu.memory_space<vmem>>, vector<32x32xf32>
      tpu.vector_store %arg5[%c0_16, %c0_17], %16 {strides = array<i32>} : memref<32x32xf32, #tpu.memory_space<vmem>>, vector<32x32xf32>,
      %cst_18 = arith.constant 0.000000e+00 : f32
      %18 = vector.broadcast %cst_18 : f32 to vector<32x32xf32>
      %c0_19 = arith.constant 0 : index
      %c0_20 = arith.constant 0 : index
      %19 = vector.load %arg6[%c0_19, %c0_20] : memref<32x32xf32, #tpu.memory_space<vmem>>, vector<32x32xf32>
      tpu.vector_store %arg6[%c0_19, %c0_20], %18 {strides = array<i32>} : memref<32x32xf32, #tpu.memory_space<vmem>>, vector<32x32xf32>,
    } else {
    }
    %c0 = arith.constant 0 : index
    %c0_1 = arith.constant 0 : index
    %3 = vector.load %arg2[%c0, %c0_1] : memref<32x32xf32, #tpu.memory_space<vmem>>, vector<32x32xf32>
    %c0_2 = arith.constant 0 : index
    %c0_3 = arith.constant 0 : index
    %4 = vector.load %arg3[%c0_2, %c0_3] : memref<32x32xf32, #tpu.memory_space<vmem>>, vector<32x32xf32>
    %c0_4 = arith.constant 0 : index
    %c0_5 = arith.constant 0 : index
    %5 = vector.load %arg5[%c0_4, %c0_5] : memref<32x32xf32, #tpu.memory_space<vmem>>, vector<32x32xf32>
    %cst = arith.constant dense<0.000000e+00> : vector<32x32xf32>
    %6 = tpu.matmul %3, %3, %cst {dimension_numbers = #tpu.dot_dimension_numbers<[0], [0], [1], [1], [0, 1, 1, 1], [], []>} : vector<32x32xf32>, vector<32x32xf32>, vector<32x32xf32> -> vector<32x32xf32>
    %7 = arith.addf %5, %6 : vector<32x32xf32>
    %c0_6 = arith.constant 0 : index
    %c0_7 = arith.constant 0 : index
    %8 = vector.load %arg5[%c0_6, %c0_7] : memref<32x32xf32, #tpu.memory_space<vmem>>, vector<32x32xf32>
    tpu.vector_store %arg5[%c0_6, %c0_7], %7 {strides = array<i32>} : memref<32x32xf32, #tpu.memory_space<vmem>>, vector<32x32xf32>,
    %c0_8 = arith.constant 0 : index
    %c0_9 = arith.constant 0 : index
    %9 = vector.load %arg6[%c0_8, %c0_9] : memref<32x32xf32, #tpu.memory_space<vmem>>, vector<32x32xf32>
    %cst_10 = arith.constant dense<0.000000e+00> : vector<32x32xf32>
    %10 = tpu.matmul %4, %4, %cst_10 {dimension_numbers = #tpu.dot_dimension_numbers<[0], [0], [1], [1], [0, 1, 1, 1], [], []>} : vector<32x32xf32>, vector<32x32xf32>, vector<32x32xf32> -> vector<32x32xf32>
    %11 = arith.addf %9, %10 : vector<32x32xf32>
    %c0_11 = arith.constant 0 : index
    %c0_12 = arith.constant 0 : index
    %12 = vector.load %arg6[%c0_11, %c0_12] : memref<32x32xf32, #tpu.memory_space<vmem>>, vector<32x32xf32>
    tpu.vector_store %arg6[%c0_11, %c0_12], %11 {strides = array<i32>} : memref<32x32xf32, #tpu.memory_space<vmem>>, vector<32x32xf32>,
    %c0_i32_13 = arith.constant 0 : i32
    %13 = arith.cmpi eq, %arg1, %c0_i32_13 : i32
    %14 = arith.extui %13 : i1 to i32
    %c0_i32_14 = arith.constant 0 : i32
    %15 = arith.cmpi ne, %14, %c0_i32_14 : i32
    scf.if %15 {
      %c0_15 = arith.constant 0 : index
      %c0_16 = arith.constant 0 : index
      %16 = vector.load %arg5[%c0_15, %c0_16] : memref<32x32xf32, #tpu.memory_space<vmem>>, vector<32x32xf32>
      %c0_17 = arith.constant 0 : index
      %c0_18 = arith.constant 0 : index
      %c0_19 = arith.constant 0 : index
      %c0_20 = arith.constant 0 : index
      %17 = vector.load %arg4[%c0_17, %c0_18, %c0_19, %c0_20] : memref<1x2x32x32xf32, #tpu.memory_space<vmem>>, vector<1x1x32x32xf32>
      %18 = vector.shape_cast %17 : vector<1x1x32x32xf32> to vector<32x32xf32>
      %19 = vector.shape_cast %16 : vector<32x32xf32> to vector<1x1x32x32xf32>
      tpu.vector_store %arg4[%c0_17, %c0_18, %c0_19, %c0_20], %19 {strides = array<i32>} : memref<1x2x32x32xf32, #tpu.memory_space<vmem>>, vector<1x1x32x32xf32>,
      %c0_21 = arith.constant 0 : index
      %c0_22 = arith.constant 0 : index
      %20 = vector.load %arg6[%c0_21, %c0_22] : memref<32x32xf32, #tpu.memory_space<vmem>>, vector<32x32xf32>
      %c0_23 = arith.constant 0 : index
      %c1 = arith.constant 1 : index
      %c0_24 = arith.constant 0 : index
      %c0_25 = arith.constant 0 : index
      %21 = vector.load %arg4[%c0_23, %c1, %c0_24, %c0_25] : memref<1x2x32x32xf32, #tpu.memory_space<vmem>>, vector<1x1x32x32xf32>
      %22 = vector.shape_cast %21 : vector<1x1x32x32xf32> to vector<32x32xf32>
      %23 = vector.shape_cast %20 : vector<32x32xf32> to vector<1x1x32x32xf32>
      tpu.vector_store %arg4[%c0_23, %c1, %c0_24, %c0_25], %23 {strides = array<i32>} : memref<1x2x32x32xf32, #tpu.memory_space<vmem>>, vector<1x1x32x32xf32>,
    } else {
    }
    return
  }
  func.func @transform_0(%arg0: i32, %arg1: i32) -> (i32, i32) {
    %c1_i32 = arith.constant 1 : i32
    %0 = arith.muli %arg0, %c1_i32 : i32
    %1 = arith.addi %0, %arg1 : i32
    %c0_i32 = arith.constant 0 : i32
    %c0_i32_0 = arith.constant 0 : i32
    return %1, %c0_i32 : i32, i32
  }
  func.func @transform_1(%arg0: i32, %arg1: i32) -> (i32, i32) {
    %c1_i32 = arith.constant 1 : i32
    %0 = arith.muli %arg0, %c1_i32 : i32
    %1 = arith.addi %0, %arg1 : i32
    %c0_i32 = arith.constant 0 : i32
    %c0_i32_0 = arith.constant 0 : i32
    return %1, %c0_i32 : i32, i32
  }
  func.func @transform_2(%arg0: i32, %arg1: i32) -> (i32, i32, i32, i32) {
    %c0_i32 = arith.constant 0 : i32
    %c0_i32_0 = arith.constant 0 : i32
    %c0_i32_1 = arith.constant 0 : i32
    %c0_i32_2 = arith.constant 0 : i32
    return %arg0, %c0_i32, %c0_i32_0, %c0_i32_1 : i32, i32, i32, i32
  }
}

</mosaic_0001>

<llo_original>
// kernel: custom-call.4
$region0: #{custom-call.4}
  %s0 = inlined_call_operand.vmem [shape: f32[32,32], index: 0, kind: input, shape index: {}]
  %s1 = inlined_call_operand.vmem [shape: f32[32,32], index: 1, kind: output, shape index: {0}]
  %s2 = inlined_call_operand.hbm [shape: s32[32], index: 2, kind: output, shape index: {1}]
  %s3 = inlined_call_operand.hbm [shape: s32[32], index: 3, kind: output, shape index: {2}]
  %4 = xla_tuple %s1, %s2, %s3
  $region1: #{custom-call.4} parent=0
    #allocation0 [shape = 'u8[16384]{0}', space=vmem, size = 0x4000, scoped, tag = 'operand span for operand 0']
    #allocation1 [shape = 'u8[16384]{0}', space=vmem, size = 0x4000, scoped, tag = 'operand span for operand 1']
    #allocation2 [shape = 'u8[4096]{0}', space=vmem, size = 0x1000, scoped, tag = 'operand span for operand 2']
    #allocation3 [shape = 'u8[512]{0}', space=vmem, size = 0x400, scoped, tag = 'packed  for operand 2']
    #allocation4 [shape = 's32[1]{0}', space=sflag, size = 0x4, scoped, tag = 'scoped memory for custom-call.4']
    #allocation5 [shape = 'u8[4096]{0}', space=vmem, size = 0x1000, scoped, tag = 'operand span for operand 3']
    #allocation6 [shape = 'u8[512]{0}', space=vmem, size = 0x400, scoped, tag = 'packed  for operand 3']
    #allocation7 [shape = 's32[1]{0}', space=sflag, size = 0x4, scoped, tag = 'scoped memory for custom-call.4']
    #allocation8 [shape = 's32[32,128]{1,0}', space=vmem, size = 0x4000, scoped, tag = 'scratch for permutations']
    %5 = vsyncpa [#allocation4], 0
    %6 = vsyncpa [#allocation7], 0
    %p8 = scmp.gt.s32.totalorder 32, 0
    // Predicated region
    $region2: #{custom-call.4} parent=1 // pred_check
      %p9 = pneg %p8
    $region3: #{custom-call.4} parent=1 // pred_check_branch
      %11 = sbr.rel (%p9) target = $region5
    $region4: #{custom-call.4} parent=1 // pred_region
      %s12 = sshra.s32 32, 3
      %p13 = scmp.gt.s32.totalorder %s12, 0
      // Predicated region
      $region6: #{custom-call.4} parent=4 // pred_check
        %p14 = pneg %p13
      $region7: #{custom-call.4} parent=4 // pred_check_branch
        %16 = sbr.rel (%p14) target = $region9
      $region8: #{custom-call.4} parent=4 // pred_region
        %s17 = ssub.s32 %s12, 1
        %s18 = smul.u32 %s17, 128
        %s19 = sshra.s32 %s18, 4
        %s20 = scalar_lea.vmem %s0, %s19
        %v21 = vld [vmem:[%s0] sm:$0xff]
        // While loop
        $region10: #{custom-call.4} parent=8 // loop_pre_header
          _
        $region11: #{custom-call.4} parent=8 // loop_header
          %s22 = sphi %s0, %s44
          %s23 = sphi [#allocation0], %s45
          %v24 = vphi %v21, %v46
          %s25 = ssub.s32 %s20, 64
          %p26 = scmp.gt.s32.totalorder %s22, %s25
        $region12: #{custom-call.4} parent=8 // loop_header_branch
          %28 = sbr.rel (%p26) target = $region16
        $region13: #{custom-call.4} parent=8 // loop_body
          %29 = vst [vmem:[%s23] sm:$0xff] %v24
          %v30 = vld [vmem:[%s22 + $0x8] sm:$0xff]
          %31 = vst [vmem:[%s23 + $0x8] sm:$0xff] %v30
          %v32 = vld [vmem:[%s22 + $0x10] sm:$0xff]
          %33 = vst [vmem:[%s23 + $0x10] sm:$0xff] %v32
          %v34 = vld [vmem:[%s22 + $0x18] sm:$0xff]
          %35 = vst [vmem:[%s23 + $0x18] sm:$0xff] %v34
          %v36 = vld [vmem:[%s22 + $0x20] sm:$0xff]
          %37 = vst [vmem:[%s23 + $0x20] sm:$0xff] %v36
          %v38 = vld [vmem:[%s22 + $0x28] sm:$0xff]
          %39 = vst [vmem:[%s23 + $0x28] sm:$0xff] %v38
          %v40 = vld [vmem:[%s22 + $0x30] sm:$0xff]
          %41 = vst [vmem:[%s23 + $0x30] sm:$0xff] %v40
          %v42 = vld [vmem:[%s22 + $0x38] sm:$0xff]
          %43 = vst [vmem:[%s23 + $0x38] sm:$0xff] %v42
        $region14: #{custom-call.4} parent=8 // loop_footer
          %s44 = scalar_lea.vmem %s22, 64
          %s45 = scalar_lea.vmem %s23, 64
          %v46 = vld [vmem:[%s22 + $0x40] sm:$0xff]
        $region15: #{custom-call.4} parent=8 // loop_footer_branch
          %47 = sbr.rel target = $region11
        $region16: #{custom-call.4} parent=8 // loop_exit
          _
        // While loop
        $region17: #{custom-call.4} parent=8 // loop_pre_header
          _
        $region18: #{custom-call.4} parent=8 // loop_header
          %s48 = sphi %s22, %s56
          %s49 = sphi %s23, %s57
          %v50 = vphi %v24, %v50
          %p51 = scmp.gt.s32.totalorder %s48, %s20
        $region19: #{custom-call.4} parent=8 // loop_header_branch
          %53 = sbr.rel (%p51) target = $region23
        $region20: #{custom-call.4} parent=8 // loop_body
          %v54 = vld [vmem:[%s48] sm:$0xff]
          %55 = vst [vmem:[%s49] sm:$0xff] %v54
        $region21: #{custom-call.4} parent=8 // loop_footer
          %s56 = scalar_lea.vmem %s48, 8
          %s57 = scalar_lea.vmem %s49, 8
        $region22: #{custom-call.4} parent=8 // loop_footer_branch
          %58 = sbr.rel target = $region18
        $region23: #{custom-call.4} parent=8 // loop_exit
          _
      $region9: #{custom-call.4} parent=4 // pred_fallthru
        _
      %s59 = sand.u32 32, 7
      %s60 = sshllo.u32 0, %s59
      %s61 = smul.u32 %s12, 128
      %s62 = sshra.s32 %s61, 4
      %s63 = scalar_lea.vmem [#allocation0], %s62
      %s64 = smul.u32 %s12, 128
      %s65 = sshra.s32 %s64, 4
      %s66 = scalar_lea.vmem %s0, %s65
      %v67 = vld [vmem:[%s66] sm:%s60]
      %68 = vst [vmem:[%s63] sm:%s60] %v67
    $region5: #{custom-call.4} parent=1 // pred_fallthru
      _
    %v69 = vld [vmem:[#allocation0] sm:$0xff]
    %70 = vst [vmem:[#allocation1] sm:$0xff] %v69
    %s71 = scalar_lea.vmem [#allocation1], 8
    %s72 = scalar_lea.vmem [#allocation0], 8
    %v73 = vld [vmem:[%s72] sm:$0xff]
    %74 = vst [vmem:[%s71] sm:$0xff] %v73
    %s75 = scalar_lea.vmem [#allocation1], 16
    %s76 = scalar_lea.vmem [#allocation0], 16
    %v77 = vld [vmem:[%s76] sm:$0xff]
    %78 = vst [vmem:[%s75] sm:$0xff] %v77
    %s79 = scalar_lea.vmem [#allocation1], 24
    %s80 = scalar_lea.vmem [#allocation0], 24
    %v81 = vld [vmem:[%s80] sm:$0xff]
    %82 = vst [vmem:[%s79] sm:$0xff] %v81
    %83 = vst [vmem:[#allocation2] sm:$0x1] 0
    %v84 = vlaneseq
    %v85 = vshrl.u32 %v84, 7
    %v86 = vmov %v85
    loop: start=0, step=1, limit=4
    $region24: #{custom-call.4} parent=1 // loop_pre_header
      _
    $region25: #{custom-call.4} parent=1 // loop_header
      %s88 = sphi 0, %s92
      %p89 = scmp.ge.s32.totalorder %s88, 4
    $region26: #{custom-call.4} parent=1 // loop_header_branch
      %91 = sbr.rel (%p89) target = $region30
    $region27: #{custom-call.4} parent=1 // loop_body
      %s93 = smul.addr %s88, 8
      %s94 = scalar_lea.vmem [#allocation8], %s93
      %s95 = smul.u32 %s88, 8
      %v96 = vstv %s95
      %v97 = vadd.s32 %v86, %v96
      %98 = vst [vmem:[%s94] sm:$0xff] %v97
    $region28: #{custom-call.4} parent=1 // loop_footer
      %s92 = sadd.s32 1, %s88
    $region29: #{custom-call.4} parent=1 // loop_footer_branch
      %87 = sbr.rel target = $region25
    $region30: #{custom-call.4} parent=1 // loop_exit
      _
    loop: start=0, step=1, limit=32
    $region31: #{custom-call.4} parent=1 // loop_pre_header
      _
    $region32: #{custom-call.4} parent=1 // loop_header
      %s100 = sphi 0, %s104
      %p101 = scmp.ge.s32.totalorder %s100, 32
    $region33: #{custom-call.4} parent=1 // loop_header_branch
      %103 = sbr.rel (%p101) target = $region37
    $region34: #{custom-call.4} parent=1 // loop_body
      %v105 = vstv %s100
      %v106 = vlaneseq
      %v107 = vshrl.u32 %v106, 7
      %v108 = vmov %v107
      %v109 = vld [vmem:[#allocation1] sm:$0xff]
      %v110 = vand.u32 2147483647, %v109
      %v112 = vstv %s100
      %vm113 = vcmp.ge.s32.totalorder %v108, %v112
      %vm114 = vcmp.lt.s32.totalorder %v108, 32
      %vm115 = vmand %vm113, %vm114
      %vm116 = vcmp.lt.f32.partialorder -inf, %v110
      %vm117 = vmand %vm115, %vm116
      %v118 = vsel %vm117, %v108, %v105
      %v119 = vsel %vm117, %v110, -inf
      %s120 = scalar_lea.vmem [#allocation1], 8
      %v121 = vld [vmem:[%s120] sm:$0xff]
      %v122 = vand.u32 2147483647, %v121
      %v123 = vadd.s32 %v108, 8
      %v124 = vstv %s100
      %vm125 = vcmp.ge.s32.totalorder %v123, %v124
      %vm126 = vcmp.lt.s32.totalorder %v123, 32
      %vm127 = vmand %vm125, %vm126
      %vm128 = vcmp.lt.f32.partialorder %v119, %v122
      %vm129 = vmand %vm127, %vm128
      %v130 = vsel %vm129, %v123, %v118
      %v131 = vsel %vm129, %v122, %v119
      %s132 = scalar_lea.vmem [#allocation1], 16
      %v133 = vld [vmem:[%s132] sm:$0xff]
      %v134 = vand.u32 2147483647, %v133
      %v135 = vadd.s32 %v108, 16
      %v136 = vstv %s100
      %vm137 = vcmp.ge.s32.totalorder %v135, %v136
      %vm138 = vcmp.lt.s32.totalorder %v135, 32
      %vm139 = vmand %vm137, %vm138
      %vm140 = vcmp.lt.f32.partialorder %v131, %v134
      %vm141 = vmand %vm139, %vm140
      %v142 = vsel %vm141, %v135, %v130
      %v143 = vsel %vm141, %v134, %v131
      %s144 = scalar_lea.vmem [#allocation1], 24
      %v145 = vld [vmem:[%s144] sm:$0xff]
      %v146 = vand.u32 2147483647, %v145
      %v147 = vadd.s32 %v108, 24
      %v148 = vstv %s100
      %vm149 = vcmp.ge.s32.totalorder %v147, %v148
      %vm150 = vcmp.lt.s32.totalorder %v147, 32
      %vm151 = vmand %vm149, %vm150
      %vm152 = vcmp.lt.f32.partialorder %v143, %v146
      %vm153 = vmand %vm151, %vm152
      %v154 = vsel %vm153, %v147, %v142
      %v155 = vsel %vm153, %v146, %v143
      %v156 = vrot.slane %v155, 1
      %v157 = vrot.slane %v154, 1
      %vm158 = vcmp.ge.f32.partialorder %v156, %v155
      %v159 = vsel %vm158, %v156, %v155
      %v160 = vsel %vm158, %v157, %v154
      %v161 = vrot.slane %v156, 1
      %v162 = vrot.slane %v157, 1
      %vm163 = vcmp.ge.f32.partialorder %v161, %v159
      %v164 = vsel %vm163, %v161, %v159
      %v165 = vsel %vm163, %v162, %v160
      %v166 = vrot.slane %v161, 1
      %v167 = vrot.slane %v162, 1
      %vm168 = vcmp.ge.f32.partialorder %v166, %v164
      %v169 = vsel %vm168, %v166, %v164
      %v170 = vsel %vm168, %v167, %v165
      %v171 = vrot.slane %v166, 1
      %v172 = vrot.slane %v167, 1
      %vm173 = vcmp.ge.f32.partialorder %v171, %v169
      %v174 = vsel %vm173, %v171, %v169
      %v175 = vsel %vm173, %v172, %v170
      %v176 = vrot.slane %v171, 1
      %v177 = vrot.slane %v172, 1
      %vm178 = vcmp.ge.f32.partialorder %v176, %v174
      %v179 = vsel %vm178, %v176, %v174
      %v180 = vsel %vm178, %v177, %v175
      %v181 = vrot.slane %v176, 1
      %v182 = vrot.slane %v177, 1
      %vm183 = vcmp.ge.f32.partialorder %v181, %v179
      %v184 = vsel %vm183, %v181, %v179
      %v185 = vsel %vm183, %v182, %v180
      %v186 = vrot.slane %v181, 1
      %v187 = vrot.slane %v182, 1
      %vm188 = vcmp.ge.f32.partialorder %v186, %v184
      %v189 = vsel %vm188, %v186, %v184
      %v190 = vsel %vm188, %v187, %v185
      %s191 = ssub.s32 128, %s100
      %192 = vrot.lane.b32.xlu0 %v190, %s191
      %v193 = vpop.permute.xlu0 %192
      %s194 = vtos %v193
      %v195 = vstv %s100
      %v196 = vlaneseq
      %v197 = vand.u32 %v196, 127
      %vm198 = vcmp.eq.s32.totalorder %v197, %v195
      %v199 = vstv %s194
      %v200 = vld [vmem:[#allocation2] ss:$0 sm:$0xff]
      %v201 = vsel %vm198, %v199, %v200
      %202 = vst [vmem:[#allocation2] sm:$0x1] %v201
      %s203 = scalar_lea.vmem [#allocation1], %s100
      %s204 = scalar_lea.vmem [#allocation1], %s194
      %v205 = vld [vmem:[%s203] ss:$0 sm:$0xff]
      %v206 = vld [vmem:[%s204] ss:$0 sm:$0xff]
      %207 = vst [vmem:[%s204] sm:$0x1] %v205
      %208 = vst [vmem:[%s203] sm:$0x1] %v206
      %s209 = scalar_lea.vmem [#allocation8], %s100
      %s210 = scalar_lea.vmem [#allocation8], %s194
      %v211 = vld [vmem:[%s209] ss:$0 sm:$0xff]
      %v212 = vld [vmem:[%s210] ss:$0 sm:$0xff]
      %213 = vst [vmem:[%s210] sm:$0x1] %v211
      %214 = vst [vmem:[%s209] sm:$0x1] %v212
      %vm215 = vcmp.ne.f32.partialorder %v206, 0.0
      %vm216 = vmand %vm198, %vm215
      %v217 = vsel %vm216, %v206, 1.0
      %v218 = vlaneseq
      %v219 = vand.u32 %v218, 127
      %v220 = vstv %s100
      %vm221 = vcmp.gt.s32.totalorder %v219, %v220
      %v222 = vsel %vm221, %v206, 0.0
      %v223 = vlaneseq
      %v224 = vshrl.u32 %v223, 7
      %v225 = vmov %v224
      %v226 = vld [vmem:[#allocation1] sm:$0xff]
      %v228 = vstv %s100
      %vm229 = vcmp.gt.s32.totalorder %v225, %v228
      %v230 = vsel %vm229, %v217, 1.0
      %v231 = vrcp.pop %v230
      %v232 = vmul.f32 %v226, %v231
      %vm233 = vmand %vm229, %vm198
      %v234 = vsel %vm233, %v232, 0.0
      %235 = vadd.xlane.f32.xlu0 %v234
      %v236 = vpop.xlane.xlu0 %235
      %v237 = vmul.f32 %v236, %v222
      %v238 = vsub.f32 %v232, %v237
      %239 = vst [vmem:[#allocation1] sm:$0xff] %v238
      %s240 = scalar_lea.vmem [#allocation1], 8
      %v241 = vld [vmem:[%s240] sm:$0xff]
      %v242 = vadd.s32 %v225, 8
      %v243 = vstv %s100
      %vm244 = vcmp.gt.s32.totalorder %v242, %v243
      %v245 = vsel %vm244, %v217, 1.0
      %v246 = vrcp.pop %v245
      %v247 = vmul.f32 %v241, %v246
      %vm248 = vmand %vm244, %vm198
      %v249 = vsel %vm248, %v247, 0.0
      %250 = vadd.xlane.f32.xlu0 %v249
      %v251 = vpop.xlane.xlu0 %250
      %v252 = vmul.f32 %v251, %v222
      %v253 = vsub.f32 %v247, %v252
      %254 = vst [vmem:[%s240] sm:$0xff] %v253
      %s255 = scalar_lea.vmem [#allocation1], 16
      %v256 = vld [vmem:[%s255] sm:$0xff]
      %v257 = vadd.s32 %v225, 16
      %v258 = vstv %s100
      %vm259 = vcmp.gt.s32.totalorder %v257, %v258
      %v260 = vsel %vm259, %v217, 1.0
      %v261 = vrcp.pop %v260
      %v262 = vmul.f32 %v256, %v261
      %vm263 = vmand %vm259, %vm198
      %v264 = vsel %vm263, %v262, 0.0
      %265 = vadd.xlane.f32.xlu0 %v264
      %v266 = vpop.xlane.xlu0 %265
      %v267 = vmul.f32 %v266, %v222
      %v268 = vsub.f32 %v262, %v267
      %269 = vst [vmem:[%s255] sm:$0xff] %v268
      %s270 = scalar_lea.vmem [#allocation1], 24
      %v271 = vld [vmem:[%s270] sm:$0xff]
      %v272 = vadd.s32 %v225, 24
      %v273 = vstv %s100
      %vm274 = vcmp.gt.s32.totalorder %v272, %v273
      %v275 = vsel %vm274, %v217, 1.0
      %v276 = vrcp.pop %v275
      %v277 = vmul.f32 %v271, %v276
      %vm278 = vmand %vm274, %vm198
      %v279 = vsel %vm278, %v277, 0.0
      %280 = vadd.xlane.f32.xlu0 %v279
      %v281 = vpop.xlane.xlu0 %280
      %v282 = vmul.f32 %v281, %v222
      %v283 = vsub.f32 %v277, %v282
      %284 = vst [vmem:[%s270] sm:$0xff] %v283
    $region35: #{custom-call.4} parent=1 // loop_footer
      %s104 = sadd.s32 1, %s100
    $region36: #{custom-call.4} parent=1 // loop_footer_branch
      %99 = sbr.rel target = $region32
    $region37: #{custom-call.4} parent=1 // loop_exit
      _
    %v285 = vld [vmem:[#allocation8] sm:$0xff]
    %s286 = scalar_lea.vmem [#allocation8], 8
    %v287 = vld [vmem:[%s286] sm:$0xff]
    %s288 = scalar_lea.vmem [#allocation8], 16
    %v289 = vld [vmem:[%s288] sm:$0xff]
    %s290 = scalar_lea.vmem [#allocation8], 24
    %v291 = vld [vmem:[%s290] sm:$0xff]
    %s292 = scalar_lea.vmem [#allocation8], 32
    %s293 = scalar_lea.vmem [#allocation8], 40
    %s294 = scalar_lea.vmem [#allocation8], 48
    %s295 = scalar_lea.vmem [#allocation8], 56
    %s296 = scalar_lea.vmem [#allocation8], 64
    %s297 = scalar_lea.vmem [#allocation8], 72
    %s298 = scalar_lea.vmem [#allocation8], 80
    %s299 = scalar_lea.vmem [#allocation8], 88
    %s300 = scalar_lea.vmem [#allocation8], 96
    %s301 = scalar_lea.vmem [#allocation8], 104
    %s302 = scalar_lea.vmem [#allocation8], 112
    %s303 = scalar_lea.vmem [#allocation8], 120
    %304 = vxpose.xlu0.b32.start [1/16] %v285, 128
    %305 = vxpose.xlu0.b32.cont [2/16] %v287, 128
    %306 = vxpose.xlu0.b32.cont [3/16] %v289, 128
    %307 = vxpose.xlu0.b32.cont [4/16] %v291, 128
    %308 = vxpose.xlu0.b32.cont [5/16] 0, 128
    %309 = vxpose.xlu0.b32.cont [6/16] 0, 128
    %310 = vxpose.xlu0.b32.cont [7/16] 0, 128
    %311 = vxpose.xlu0.b32.cont [8/16] 0, 128
    %312 = vxpose.xlu0.b32.cont [9/16] 0, 128
    %313 = vxpose.xlu0.b32.cont [10/16] 0, 128
    %314 = vxpose.xlu0.b32.cont [11/16] 0, 128
    %315 = vxpose.xlu0.b32.cont [12/16] 0, 128
    %316 = vxpose.xlu0.b32.cont [13/16] 0, 128
    %317 = vxpose.xlu0.b32.cont [14/16] 0, 128
    %318 = vxpose.xlu0.b32.cont [15/16] 0, 128
    %319 = vxpose.xlu0.b32.end [16/16] 0, 128
    %v320 = vpop.trf.xlu0
    %v321 = vpop.trf.xlu0
    %v322 = vpop.trf.xlu0
    %v323 = vpop.trf.xlu0
    %v324 = vpop.trf.xlu0
    %v325 = vpop.trf.xlu0
    %v326 = vpop.trf.xlu0
    %v327 = vpop.trf.xlu0
    %v328 = vpop.trf.xlu0
    %v329 = vpop.trf.xlu0
    %v330 = vpop.trf.xlu0
    %v331 = vpop.trf.xlu0
    %v332 = vpop.trf.xlu0
    %v333 = vpop.trf.xlu0
    %v334 = vpop.trf.xlu0
    %v335 = vpop.trf.xlu0
    %336 = vst [vmem:[#allocation5] sm:$0x1] %v320
    %s338 = sshllo.u32 0, 1
    %v340 = vld [vmem:[#allocation2] sm:%s338]
    %s341 = sshllo.u32 0, 1
    %342 = vst [vmem:[#allocation3] sm:%s341] %v340
    %s344 = sshllo.u32 0, 1
    %v346 = vld [vmem:[#allocation5] sm:%s344]
    %s347 = sshllo.u32 0, 1
    %348 = vst [vmem:[#allocation6] sm:%s347] %v346
    %p350 = scmp.gt.s32.totalorder 32, 0
    // Predicated region
    $region38: #{custom-call.4} parent=1 // pred_check
      %p351 = pneg %p350
    $region39: #{custom-call.4} parent=1 // pred_check_branch
      %353 = sbr.rel (%p351) target = $region41
    $region40: #{custom-call.4} parent=1 // pred_region
      %s354 = sshra.s32 32, 3
      %p355 = scmp.gt.s32.totalorder %s354, 0
      // Predicated region
      $region42: #{custom-call.4} parent=40 // pred_check
        %p356 = pneg %p355
      $region43: #{custom-call.4} parent=40 // pred_check_branch
        %358 = sbr.rel (%p356) target = $region45
      $region44: #{custom-call.4} parent=40 // pred_region
        %s359 = ssub.s32 %s354, 1
        %s360 = smul.u32 %s359, 128
        %s361 = sshra.s32 %s360, 4
        %s362 = scalar_lea.vmem [#allocation1], %s361
        %v363 = vld [vmem:[#allocation1] sm:$0xff]
        // While loop
        $region46: #{custom-call.4} parent=44 // loop_pre_header
          _
        $region47: #{custom-call.4} parent=44 // loop_header
          %s364 = sphi [#allocation1], %s386
          %s365 = sphi %s1, %s387
          %v366 = vphi %v363, %v388
          %s367 = ssub.s32 %s362, 64
          %p368 = scmp.gt.s32.totalorder %s364, %s367
        $region48: #{custom-call.4} parent=44 // loop_header_branch
          %370 = sbr.rel (%p368) target = $region52
        $region49: #{custom-call.4} parent=44 // loop_body
          %371 = vst [vmem:[%s365] sm:$0xff] %v366
          %v372 = vld [vmem:[%s364 + $0x8] sm:$0xff]
          %373 = vst [vmem:[%s365 + $0x8] sm:$0xff] %v372
          %v374 = vld [vmem:[%s364 + $0x10] sm:$0xff]
          %375 = vst [vmem:[%s365 + $0x10] sm:$0xff] %v374
          %v376 = vld [vmem:[%s364 + $0x18] sm:$0xff]
          %377 = vst [vmem:[%s365 + $0x18] sm:$0xff] %v376
          %v378 = vld [vmem:[%s364 + $0x20] sm:$0xff]
          %379 = vst [vmem:[%s365 + $0x20] sm:$0xff] %v378
          %v380 = vld [vmem:[%s364 + $0x28] sm:$0xff]
          %381 = vst [vmem:[%s365 + $0x28] sm:$0xff] %v380
          %v382 = vld [vmem:[%s364 + $0x30] sm:$0xff]
          %383 = vst [vmem:[%s365 + $0x30] sm:$0xff] %v382
          %v384 = vld [vmem:[%s364 + $0x38] sm:$0xff]
          %385 = vst [vmem:[%s365 + $0x38] sm:$0xff] %v384
        $region50: #{custom-call.4} parent=44 // loop_footer
          %s386 = scalar_lea.vmem %s364, 64
          %s387 = scalar_lea.vmem %s365, 64
          %v388 = vld [vmem:[%s364 + $0x40] sm:$0xff]
        $region51: #{custom-call.4} parent=44 // loop_footer_branch
          %389 = sbr.rel target = $region47
        $region52: #{custom-call.4} parent=44 // loop_exit
          _
        // While loop
        $region53: #{custom-call.4} parent=44 // loop_pre_header
          _
        $region54: #{custom-call.4} parent=44 // loop_header
          %s390 = sphi %s364, %s398
          %s391 = sphi %s365, %s399
          %v392 = vphi %v366, %v392
          %p393 = scmp.gt.s32.totalorder %s390, %s362
        $region55: #{custom-call.4} parent=44 // loop_header_branch
          %395 = sbr.rel (%p393) target = $region59
        $region56: #{custom-call.4} parent=44 // loop_body
          %v396 = vld [vmem:[%s390] sm:$0xff]
          %397 = vst [vmem:[%s391] sm:$0xff] %v396
        $region57: #{custom-call.4} parent=44 // loop_footer
          %s398 = scalar_lea.vmem %s390, 8
          %s399 = scalar_lea.vmem %s391, 8
        $region58: #{custom-call.4} parent=44 // loop_footer_branch
          %400 = sbr.rel target = $region54
        $region59: #{custom-call.4} parent=44 // loop_exit
          _
      $region45: #{custom-call.4} parent=40 // pred_fallthru
        _
      %s401 = sand.u32 32, 7
      %s402 = sshllo.u32 0, %s401
      %s403 = smul.u32 %s354, 128
      %s404 = sshra.s32 %s403, 4
      %s405 = scalar_lea.vmem %s1, %s404
      %s406 = smul.u32 %s354, 128
      %s407 = sshra.s32 %s406, 4
      %s408 = scalar_lea.vmem [#allocation1], %s407
      %v409 = vld [vmem:[%s408] sm:%s402]
      %410 = vst [vmem:[%s405] sm:%s402] %v409
    $region41: #{custom-call.4} parent=1 // pred_fallthru
      _
    // Predicated region
    $region60: #{custom-call.4} parent=1 // pred_check
      _
    $region61: #{custom-call.4} parent=1 // pred_check_branch
      %412 = sbr.rel (0) target = $region63
    $region62: #{custom-call.4} parent=1 // pred_region
      %s414 = ssub.s32 16, 16
      %415 = vsyncadd [#allocation4], %s414
      %s416 = sshll.u32 [#allocation3], 4
      %s417 = int_to_ptr.vmem [resolvable:$true] %s416
      %419 = dma.vmem_to_hbm [thread:$0]  %s417, 16, %s2, [#allocation4]
    $region63: #{custom-call.4} parent=1 // pred_fallthru
      _
    // Predicated region
    $region64: #{custom-call.4} parent=1 // pred_check
      _
    $region65: #{custom-call.4} parent=1 // pred_check_branch
      %421 = sbr.rel (0) target = $region67
    $region66: #{custom-call.4} parent=1 // pred_region
      %s423 = ssub.s32 16, 16
      %424 = vsyncadd [#allocation7], %s423
      %s425 = sshll.u32 [#allocation6], 4
      %s426 = int_to_ptr.vmem [resolvable:$true] %s425
      %428 = dma.vmem_to_hbm [thread:$0]  %s426, 16, %s3, [#allocation7]
    $region67: #{custom-call.4} parent=1 // pred_fallthru
      _
    // Predicated region
    $region68: #{custom-call.4} parent=1 // pred_check
      _
    $region69: #{custom-call.4} parent=1 // pred_check_branch
      %430 = sbr.rel (0) target = $region71
    $region70: #{custom-call.4} parent=1 // pred_region
      %431 = dma.done [#allocation4], 16
    $region71: #{custom-call.4} parent=1 // pred_fallthru
      _
    // Predicated region
    $region72: #{custom-call.4} parent=1 // pred_check
      _
    $region73: #{custom-call.4} parent=1 // pred_check_branch
      %433 = sbr.rel (0) target = $region75
    $region74: #{custom-call.4} parent=1 // pred_region
      %434 = dma.done [#allocation7], 16
    $region75: #{custom-call.4} parent=1 // pred_fallthru
      _
    %435 = vsyncpa [#allocation4], 1
    %436 = vsyncpa [#allocation7], 1

// kernel: custom-call.5
$region0: #{custom-call.5}
  %s0 = inlined_call_operand.vmem [shape: f32[2,32,32], index: 0, kind: input, shape index: {}]
  %s1 = inlined_call_operand.vmem [shape: f32[2,32,32], index: 1, kind: output, shape index: {0}]
  %s2 = inlined_call_operand.hbm [shape: s32[2,32], index: 2, kind: output, shape index: {1}]
  %s3 = inlined_call_operand.hbm [shape: s32[2,32], index: 3, kind: output, shape index: {2}]
  %4 = xla_tuple %s1, %s2, %s3
  $region1: #{custom-call.5} parent=0
    #allocation0 [shape = 'u8[32768]{0}', space=vmem, size = 0x8000, scoped, tag = 'operand span for operand 0']
    #allocation1 [shape = 'u8[32768]{0}', space=vmem, size = 0x8000, scoped, tag = 'operand span for operand 1']
    #allocation2 [shape = 'u8[4096]{0}', space=vmem, size = 0x1000, scoped, tag = 'operand span for operand 2']
    #allocation3 [shape = 'u8[2048]{0}', space=vmem, size = 0x800, scoped, tag = 'packed  for operand 2']
    #allocation4 [shape = 's32[2]{0}', space=sflag, size = 0x8, scoped, tag = 'scoped memory for custom-call.5']
    #allocation5 [shape = 'u8[4096]{0}', space=vmem, size = 0x1000, scoped, tag = 'operand span for operand 3']
    #allocation6 [shape = 'u8[2048]{0}', space=vmem, size = 0x800, scoped, tag = 'packed  for operand 3']
    #allocation7 [shape = 's32[2]{0}', space=sflag, size = 0x8, scoped, tag = 'scoped memory for custom-call.5']
    %5 = vsyncpa [#allocation4], 0
    %s6 = scalar_lea.sflag [#allocation4], 1
    %7 = vsyncpa %s6, 0
    %8 = vsyncpa [#allocation7], 0
    %s9 = scalar_lea.sflag [#allocation7], 1
    %10 = vsyncpa %s9, 0
    loop: start=0, step=1, limit=4
    $region2: #{custom-call.5} parent=1 // loop_pre_header
      _
    $region3: #{custom-call.5} parent=1 // loop_header
      %s12 = sphi 0, %s16
      %p13 = scmp.ge.s32.totalorder %s12, 4
      %s24 = sphi 0, %s26
      %s27 = sphi 0, %s24
      %s28 = sphi 0, %s27
      %s44 = sphi 0, %s28
      %s52 = sphi 0, %s54
      %s55 = sphi 0, %s52
      %s56 = sphi 0, %s55
      %s72 = sphi 0, %s56
    $region4: #{custom-call.5} parent=1 // loop_header_branch
      %15 = sbr.rel (%p13) target = $region8
    $region5: #{custom-call.5} parent=1 // loop_body
      %s17 = ssub.s32 %s12, 1
      %s18 = ssub.s32 %s12, 2
      %s19 = sadd.s32 %s12, 1
      %s20 = sshrl.u32 %s12, 3
      %s21 = sshrl.u32 %s19, 3
      %s22 = ssub.s32 %s20, %s21
      %p23 = scmp.eq.s32.totalorder %s22, 0
      %s25 = sadd.s32 %s24, 1
      %s26 = scalar_select %p23, %s24, %s25
      %p29 = pneg %p23
      %p30 = scmp.eq.s32.totalorder %s12, 1
      %p31 = por %p29, %p30
      %p32 = scmp.ne.s32.totalorder %s24, %s27
      %p33 = scmp.eq.s32.totalorder %s12, 0
      %p34 = por %p32, %p33
      %p35 = scmp.ne.s32.totalorder %s24, %s27
      %p36 = scmp.eq.s32.totalorder %s17, 1
      %p37 = por %p35, %p36
      %p38 = scmp.ne.s32.totalorder %s27, %s28
      %p39 = scmp.eq.s32.totalorder %s17, 0
      %p40 = por %p38, %p39
      %p41 = scmp.ne.s32.totalorder %s27, %s28
      %p42 = scmp.eq.s32.totalorder %s18, 1
      %p43 = por %p41, %p42
      %p45 = scmp.ne.s32.totalorder %s28, %s44
      %p46 = scmp.eq.s32.totalorder %s18, 0
      %p47 = por %p45, %p46
      %s48 = sshrl.u32 %s12, 3
      %s49 = sshrl.u32 %s19, 3
      %s50 = ssub.s32 %s48, %s49
      %p51 = scmp.eq.s32.totalorder %s50, 0
      %s53 = sadd.s32 %s52, 1
      %s54 = scalar_select %p51, %s52, %s53
      %p57 = pneg %p51
      %p58 = scmp.eq.s32.totalorder %s12, 1
      %p59 = por %p57, %p58
      %p60 = scmp.ne.s32.totalorder %s52, %s55
      %p61 = scmp.eq.s32.totalorder %s12, 0
      %p62 = por %p60, %p61
      %p63 = scmp.ne.s32.totalorder %s52, %s55
      %p64 = scmp.eq.s32.totalorder %s17, 1
      %p65 = por %p63, %p64
      %p66 = scmp.ne.s32.totalorder %s55, %s56
      %p67 = scmp.eq.s32.totalorder %s17, 0
      %p68 = por %p66, %p67
      %p69 = scmp.ne.s32.totalorder %s55, %s56
      %p70 = scmp.eq.s32.totalorder %s18, 1
      %p71 = por %p69, %p70
      %p73 = scmp.ne.s32.totalorder %s56, %s72
      %p74 = scmp.eq.s32.totalorder %s18, 0
      %p75 = por %p73, %p74
      %p76 = scmp.le.s32.totalorder 1, %s12
      %p77 = scmp.lt.s32.totalorder %s12, 3
      %p78 = pnand %p76, %p77
      %p79 = pneg %p78
      // Predicated region
      $region9: #{custom-call.5} parent=5 // pred_check
        _
      $region10: #{custom-call.5} parent=5 // pred_check_branch
        %81 = sbr.rel (%p78) target = $region12
      $region11: #{custom-call.5} parent=5 // pred_region
        %s82 = ssub.s32 %s12, 1
      $region12: #{custom-call.5} parent=5 // pred_fallthru
        _
      %p83 = scmp.lt.s32.totalorder %s12, 2
      // Predicated region
      $region13: #{custom-call.5} parent=5 // pred_check
        %p84 = pneg %p83
      $region14: #{custom-call.5} parent=5 // pred_check_branch
        %86 = sbr.rel (%p84) target = $region16
      $region15: #{custom-call.5} parent=5 // pred_region
        %s87 = sand.u32 %s12, 1
        %s88 = sand.u32 %s12, 1
        %s89 = smul.addr %s88, 32
        %s90 = scalar_lea.vmem [#allocation0], %s89
        %s91 = smul.addr %s12, 32
        %s92 = scalar_lea.vmem %s0, %s91
        // Predicated region
        $region17: #{custom-call.5} parent=15 // pred_check
          _
        $region18: #{custom-call.5} parent=15 // pred_check_branch
          %94 = sbr.rel (0) target = $region20
        $region19: #{custom-call.5} parent=15 // pred_region
          // Predicated region
          $region21: #{custom-call.5} parent=19 // pred_check
            _
          $region22: #{custom-call.5} parent=19 // pred_check_branch
            %96 = sbr.rel (0) target = $region24
          $region23: #{custom-call.5} parent=19 // pred_region
            loop: start=0, step=1, limit=1
            $region25: #{custom-call.5} parent=23 // loop_pre_header
              _
            $region26: #{custom-call.5} parent=23 // loop_header
              %s98 = sphi 0, %s102
              %p99 = scmp.ge.s32.totalorder %s98, 1
              %s103 = sphi %s92, %s92
              %s104 = sphi %s90, %s90
            $region27: #{custom-call.5} parent=23 // loop_header_branch
              %101 = sbr.rel (%p99) target = $region31
            $region28: #{custom-call.5} parent=23 // loop_body
              %v105 = vld [vmem:[%s103] sm:$0xff]
              %106 = vst [vmem:[%s104] sm:$0xff] %v105
              %v107 = vld [vmem:[%s103 + $0x8] sm:$0xff]
              %108 = vst [vmem:[%s104 + $0x8] sm:$0xff] %v107
              %v109 = vld [vmem:[%s103 + $0x10] sm:$0xff]
              %110 = vst [vmem:[%s104 + $0x10] sm:$0xff] %v109
              %v111 = vld [vmem:[%s103 + $0x18] sm:$0xff]
              %112 = vst [vmem:[%s104 + $0x18] sm:$0xff] %v111
            $region29: #{custom-call.5} parent=23 // loop_footer
              %s102 = sadd.s32 1, %s98
            $region30: #{custom-call.5} parent=23 // loop_footer_branch
              %97 = sbr.rel target = $region26
            $region31: #{custom-call.5} parent=23 // loop_exit
              _
          $region24: #{custom-call.5} parent=19 // pred_fallthru
            _
          // Predicated region
          $region32: #{custom-call.5} parent=19 // pred_check
            _
          $region33: #{custom-call.5} parent=19 // pred_check_branch
            %114 = sbr.rel target = $region35
          $region34: #{custom-call.5} parent=19 // pred_region
            _
          $region35: #{custom-call.5} parent=19 // pred_fallthru
            _
        $region20: #{custom-call.5} parent=15 // pred_fallthru
          _
        %115 = vnop
      $region16: #{custom-call.5} parent=5 // pred_fallthru
        _
      %p116 = scmp.le.s32.totalorder 1, %s12
      %p117 = scmp.lt.s32.totalorder %s12, 3
      %p118 = pnand %p116, %p117
      %p119 = pneg %p118
      // Predicated region
      $region36: #{custom-call.5} parent=5 // pred_check
        _
      $region37: #{custom-call.5} parent=5 // pred_check_branch
        %121 = sbr.rel (%p118) target = $region39
      $region38: #{custom-call.5} parent=5 // pred_region
        #allocation8 [shape = 's32[32,128]{1,0}', space=vmem, size = 0x4000, scoped, tag = 'scratch for permutations']
        %s122 = ssub.s32 %s12, 1
        %s123 = sand.u32 %s17, 1
        %s124 = sand.u32 %s17, 1
        %s125 = smul.addr %s124, 32
        %s126 = scalar_lea.vmem [#allocation0], %s125
        %s127 = sand.u32 %s17, 1
        %s128 = sand.u32 %s17, 1
        %s129 = smul.addr %s128, 32
        %s130 = scalar_lea.vmem [#allocation0], %s129
        %s131 = sand.u32 %s17, 1
        %s132 = sand.u32 %s17, 1
        %s133 = smul.addr %s132, 32
        %s134 = scalar_lea.vmem [#allocation1], %s133
        %p135 = pneg %p40
        %p136 = pneg %p37
        %s137 = sand.u32 %s27, 1
        %s138 = scalar_lea.sflag [#allocation4], %s137
        %s139 = sand.u32 %s27, 1
        %s140 = smul.addr %s139, 2
        %s141 = scalar_lea.vmem [#allocation3], %s140
        %p142 = pneg %p68
        %p143 = pneg %p65
        %s144 = sand.u32 %s55, 1
        %s145 = scalar_lea.sflag [#allocation7], %s144
        %s146 = sand.u32 %s55, 1
        %s147 = smul.addr %s146, 2
        %s148 = scalar_lea.vmem [#allocation6], %s147
        %s149 = sshrl.u32 %s17, 3
        %s150 = sshrl.u32 %s17, 3
        %v151 = vld [vmem:[%s126] sm:$0xff]
        %152 = vst [vmem:[%s134] sm:$0xff] %v151
        %s153 = scalar_lea.vmem %s134, 8 [#allocation1]
        %s154 = scalar_lea.vmem %s126, 8 [#allocation0]
        %v155 = vld [vmem:[%s154] sm:$0xff]
        %156 = vst [vmem:[%s153] sm:$0xff] %v155
        %s157 = scalar_lea.vmem %s134, 16 [#allocation1]
        %s158 = scalar_lea.vmem %s126, 16 [#allocation0]
        %v159 = vld [vmem:[%s158] sm:$0xff]
        %160 = vst [vmem:[%s157] sm:$0xff] %v159
        %s161 = scalar_lea.vmem %s134, 24 [#allocation1]
        %s162 = scalar_lea.vmem %s126, 24 [#allocation0]
        %v163 = vld [vmem:[%s162] sm:$0xff]
        %164 = vst [vmem:[%s161] sm:$0xff] %v163
        %s165 = sand.u32 %s17, 7
        %s166 = scalar_lea.vmem [#allocation2], %s165
        %s167 = sand.u32 %s17, 7
        %s168 = scalar_lea.vmem [#allocation5], %s167
        %169 = vst [vmem:[%s166] sm:$0x1] 0
        %v170 = vlaneseq
        %v171 = vshrl.u32 %v170, 7
        %v172 = vmov %v171
        loop: start=0, step=1, limit=4
        $region40: #{custom-call.5} parent=38 // loop_pre_header
          _
        $region41: #{custom-call.5} parent=38 // loop_header
          %s174 = sphi 0, %s178
          %p175 = scmp.ge.s32.totalorder %s174, 4
        $region42: #{custom-call.5} parent=38 // loop_header_branch
          %177 = sbr.rel (%p175) target = $region46
        $region43: #{custom-call.5} parent=38 // loop_body
          %s179 = smul.addr %s174, 8
          %s180 = scalar_lea.vmem [#allocation8], %s179
          %s181 = smul.u32 %s174, 8
          %v182 = vstv %s181
          %v183 = vadd.s32 %v172, %v182
          %184 = vst [vmem:[%s180] sm:$0xff] %v183
        $region44: #{custom-call.5} parent=38 // loop_footer
          %s178 = sadd.s32 1, %s174
        $region45: #{custom-call.5} parent=38 // loop_footer_branch
          %173 = sbr.rel target = $region41
        $region46: #{custom-call.5} parent=38 // loop_exit
          _
        loop: start=0, step=1, limit=32
        $region47: #{custom-call.5} parent=38 // loop_pre_header
          _
        $region48: #{custom-call.5} parent=38 // loop_header
          %s186 = sphi 0, %s190
          %p187 = scmp.ge.s32.totalorder %s186, 32
        $region49: #{custom-call.5} parent=38 // loop_header_branch
          %189 = sbr.rel (%p187) target = $region53
        $region50: #{custom-call.5} parent=38 // loop_body
          %v191 = vstv %s186
          %v192 = vlaneseq
          %v193 = vshrl.u32 %v192, 7
          %v194 = vmov %v193
          %v195 = vld [vmem:[%s134] sm:$0xff]
          %v196 = vand.u32 2147483647, %v195
          %v198 = vstv %s186
          %vm199 = vcmp.ge.s32.totalorder %v194, %v198
          %vm200 = vcmp.lt.s32.totalorder %v194, 32
          %vm201 = vmand %vm199, %vm200
          %vm202 = vcmp.lt.f32.partialorder -inf, %v196
          %vm203 = vmand %vm201, %vm202
          %v204 = vsel %vm203, %v194, %v191
          %v205 = vsel %vm203, %v196, -inf
          %s206 = scalar_lea.vmem %s134, 8 [#allocation1]
          %v207 = vld [vmem:[%s206] sm:$0xff]
          %v208 = vand.u32 2147483647, %v207
          %v209 = vadd.s32 %v194, 8
          %v210 = vstv %s186
          %vm211 = vcmp.ge.s32.totalorder %v209, %v210
          %vm212 = vcmp.lt.s32.totalorder %v209, 32
          %vm213 = vmand %vm211, %vm212
          %vm214 = vcmp.lt.f32.partialorder %v205, %v208
          %vm215 = vmand %vm213, %vm214
          %v216 = vsel %vm215, %v209, %v204
          %v217 = vsel %vm215, %v208, %v205
          %s218 = scalar_lea.vmem %s134, 16 [#allocation1]
          %v219 = vld [vmem:[%s218] sm:$0xff]
          %v220 = vand.u32 2147483647, %v219
          %v221 = vadd.s32 %v194, 16
          %v222 = vstv %s186
          %vm223 = vcmp.ge.s32.totalorder %v221, %v222
          %vm224 = vcmp.lt.s32.totalorder %v221, 32
          %vm225 = vmand %vm223, %vm224
          %vm226 = vcmp.lt.f32.partialorder %v217, %v220
          %vm227 = vmand %vm225, %vm226
          %v228 = vsel %vm227, %v221, %v216
          %v229 = vsel %vm227, %v220, %v217
          %s230 = scalar_lea.vmem %s134, 24 [#allocation1]
          %v231 = vld [vmem:[%s230] sm:$0xff]
          %v232 = vand.u32 2147483647, %v231
          %v233 = vadd.s32 %v194, 24
          %v234 = vstv %s186
          %vm235 = vcmp.ge.s32.totalorder %v233, %v234
          %vm236 = vcmp.lt.s32.totalorder %v233, 32
          %vm237 = vmand %vm235, %vm236
          %vm238 = vcmp.lt.f32.partialorder %v229, %v232
          %vm239 = vmand %vm237, %vm238
          %v240 = vsel %vm239, %v233, %v228
          %v241 = vsel %vm239, %v232, %v229
          %v242 = vrot.slane %v241, 1
          %v243 = vrot.slane %v240, 1
          %vm244 = vcmp.ge.f32.partialorder %v242, %v241
          %v245 = vsel %vm244, %v242, %v241
          %v246 = vsel %vm244, %v243, %v240
          %v247 = vrot.slane %v242, 1
          %v248 = vrot.slane %v243, 1
          %vm249 = vcmp.ge.f32.partialorder %v247, %v245
          %v250 = vsel %vm249, %v247, %v245
          %v251 = vsel %vm249, %v248, %v246
          %v252 = vrot.slane %v247, 1
          %v253 = vrot.slane %v248, 1
          %vm254 = vcmp.ge.f32.partialorder %v252, %v250
          %v255 = vsel %vm254, %v252, %v250
          %v256 = vsel %vm254, %v253, %v251
          %v257 = vrot.slane %v252, 1
          %v258 = vrot.slane %v253, 1
          %vm259 = vcmp.ge.f32.partialorder %v257, %v255
          %v260 = vsel %vm259, %v257, %v255
          %v261 = vsel %vm259, %v258, %v256
          %v262 = vrot.slane %v257, 1
          %v263 = vrot.slane %v258, 1
          %vm264 = vcmp.ge.f32.partialorder %v262, %v260
          %v265 = vsel %vm264, %v262, %v260
          %v266 = vsel %vm264, %v263, %v261
          %v267 = vrot.slane %v262, 1
          %v268 = vrot.slane %v263, 1
          %vm269 = vcmp.ge.f32.partialorder %v267, %v265
          %v270 = vsel %vm269, %v267, %v265
          %v271 = vsel %vm269, %v268, %v266
          %v272 = vrot.slane %v267, 1
          %v273 = vrot.slane %v268, 1
          %vm274 = vcmp.ge.f32.partialorder %v272, %v270
          %v275 = vsel %vm274, %v272, %v270
          %v276 = vsel %vm274, %v273, %v271
          %s277 = ssub.s32 128, %s186
          %278 = vrot.lane.b32.xlu0 %v276, %s277
          %v279 = vpop.permute.xlu0 %278
          %s280 = vtos %v279
          %v281 = vstv %s186
          %v282 = vlaneseq
          %v283 = vand.u32 %v282, 127
          %vm284 = vcmp.eq.s32.totalorder %v283, %v281
          %v285 = vstv %s280
          %v286 = vld [vmem:[%s166] ss:$0 sm:$0xff]
          %v287 = vsel %vm284, %v285, %v286
          %288 = vst [vmem:[%s166] sm:$0x1] %v287
          %s289 = scalar_lea.vmem %s134, %s186 [#allocation1]
          %s290 = scalar_lea.vmem %s134, %s280 [#allocation1]
          %v291 = vld [vmem:[%s289] ss:$0 sm:$0xff]
          %v292 = vld [vmem:[%s290] ss:$0 sm:$0xff]
          %293 = vst [vmem:[%s290] sm:$0x1] %v291
          %294 = vst [vmem:[%s289] sm:$0x1] %v292
          %s295 = scalar_lea.vmem [#allocation8], %s186
          %s296 = scalar_lea.vmem [#allocation8], %s280
          %v297 = vld [vmem:[%s295] ss:$0 sm:$0xff]
          %v298 = vld [vmem:[%s296] ss:$0 sm:$0xff]
          %299 = vst [vmem:[%s296] sm:$0x1] %v297
          %300 = vst [vmem:[%s295] sm:$0x1] %v298
          %vm301 = vcmp.ne.f32.partialorder %v292, 0.0
          %vm302 = vmand %vm284, %vm301
          %v303 = vsel %vm302, %v292, 1.0
          %v304 = vlaneseq
          %v305 = vand.u32 %v304, 127
          %v306 = vstv %s186
          %vm307 = vcmp.gt.s32.totalorder %v305, %v306
          %v308 = vsel %vm307, %v292, 0.0
          %v309 = vlaneseq
          %v310 = vshrl.u32 %v309, 7
          %v311 = vmov %v310
          %v312 = vld [vmem:[%s134] sm:$0xff]
          %v314 = vstv %s186
          %vm315 = vcmp.gt.s32.totalorder %v311, %v314
          %v316 = vsel %vm315, %v303, 1.0
          %v317 = vrcp.pop %v316
          %v318 = vmul.f32 %v312, %v317
          %vm319 = vmand %vm315, %vm284
          %v320 = vsel %vm319, %v318, 0.0
          %321 = vadd.xlane.f32.xlu0 %v320
          %v322 = vpop.xlane.xlu0 %321
          %v323 = vmul.f32 %v322, %v308
          %v324 = vsub.f32 %v318, %v323
          %325 = vst [vmem:[%s134] sm:$0xff] %v324
          %s326 = scalar_lea.vmem %s134, 8 [#allocation1]
          %v327 = vld [vmem:[%s326] sm:$0xff]
          %v328 = vadd.s32 %v311, 8
          %v329 = vstv %s186
          %vm330 = vcmp.gt.s32.totalorder %v328, %v329
          %v331 = vsel %vm330, %v303, 1.0
          %v332 = vrcp.pop %v331
          %v333 = vmul.f32 %v327, %v332
          %vm334 = vmand %vm330, %vm284
          %v335 = vsel %vm334, %v333, 0.0
          %336 = vadd.xlane.f32.xlu0 %v335
          %v337 = vpop.xlane.xlu0 %336
          %v338 = vmul.f32 %v337, %v308
          %v339 = vsub.f32 %v333, %v338
          %340 = vst [vmem:[%s326] sm:$0xff] %v339
          %s341 = scalar_lea.vmem %s134, 16 [#allocation1]
          %v342 = vld [vmem:[%s341] sm:$0xff]
          %v343 = vadd.s32 %v311, 16
          %v344 = vstv %s186
          %vm345 = vcmp.gt.s32.totalorder %v343, %v344
          %v346 = vsel %vm345, %v303, 1.0
          %v347 = vrcp.pop %v346
          %v348 = vmul.f32 %v342, %v347
          %vm349 = vmand %vm345, %vm284
          %v350 = vsel %vm349, %v348, 0.0
          %351 = vadd.xlane.f32.xlu0 %v350
          %v352 = vpop.xlane.xlu0 %351
          %v353 = vmul.f32 %v352, %v308
          %v354 = vsub.f32 %v348, %v353
          %355 = vst [vmem:[%s341] sm:$0xff] %v354
          %s356 = scalar_lea.vmem %s134, 24 [#allocation1]
          %v357 = vld [vmem:[%s356] sm:$0xff]
          %v358 = vadd.s32 %v311, 24
          %v359 = vstv %s186
          %vm360 = vcmp.gt.s32.totalorder %v358, %v359
          %v361 = vsel %vm360, %v303, 1.0
          %v362 = vrcp.pop %v361
          %v363 = vmul.f32 %v357, %v362
          %vm364 = vmand %vm360, %vm284
          %v365 = vsel %vm364, %v363, 0.0
          %366 = vadd.xlane.f32.xlu0 %v365
          %v367 = vpop.xlane.xlu0 %366
          %v368 = vmul.f32 %v367, %v308
          %v369 = vsub.f32 %v363, %v368
          %370 = vst [vmem:[%s356] sm:$0xff] %v369
        $region51: #{custom-call.5} parent=38 // loop_footer
          %s190 = sadd.s32 1, %s186
        $region52: #{custom-call.5} parent=38 // loop_footer_branch
          %185 = sbr.rel target = $region48
        $region53: #{custom-call.5} parent=38 // loop_exit
          _
        %v371 = vld [vmem:[#allocation8] sm:$0xff]
        %s372 = scalar_lea.vmem [#allocation8], 8
        %v373 = vld [vmem:[%s372] sm:$0xff]
        %s374 = scalar_lea.vmem [#allocation8], 16
        %v375 = vld [vmem:[%s374] sm:$0xff]
        %s376 = scalar_lea.vmem [#allocation8], 24
        %v377 = vld [vmem:[%s376] sm:$0xff]
        %s378 = scalar_lea.vmem [#allocation8], 32
        %s379 = scalar_lea.vmem [#allocation8], 40
        %s380 = scalar_lea.vmem [#allocation8], 48
        %s381 = scalar_lea.vmem [#allocation8], 56
        %s382 = scalar_lea.vmem [#allocation8], 64
        %s383 = scalar_lea.vmem [#allocation8], 72
        %s384 = scalar_lea.vmem [#allocation8], 80
        %s385 = scalar_lea.vmem [#allocation8], 88
        %s386 = scalar_lea.vmem [#allocation8], 96
        %s387 = scalar_lea.vmem [#allocation8], 104
        %s388 = scalar_lea.vmem [#allocation8], 112
        %s389 = scalar_lea.vmem [#allocation8], 120
        %390 = vxpose.xlu0.b32.start [1/16] %v371, 128
        %391 = vxpose.xlu0.b32.cont [2/16] %v373, 128
        %392 = vxpose.xlu0.b32.cont [3/16] %v375, 128
        %393 = vxpose.xlu0.b32.cont [4/16] %v377, 128
        %394 = vxpose.xlu0.b32.cont [5/16] 0, 128
        %395 = vxpose.xlu0.b32.cont [6/16] 0, 128
        %396 = vxpose.xlu0.b32.cont [7/16] 0, 128
        %397 = vxpose.xlu0.b32.cont [8/16] 0, 128
        %398 = vxpose.xlu0.b32.cont [9/16] 0, 128
        %399 = vxpose.xlu0.b32.cont [10/16] 0, 128
        %400 = vxpose.xlu0.b32.cont [11/16] 0, 128
        %401 = vxpose.xlu0.b32.cont [12/16] 0, 128
        %402 = vxpose.xlu0.b32.cont [13/16] 0, 128
        %403 = vxpose.xlu0.b32.cont [14/16] 0, 128
        %404 = vxpose.xlu0.b32.cont [15/16] 0, 128
        %405 = vxpose.xlu0.b32.end [16/16] 0, 128
        %v406 = vpop.trf.xlu0
        %v407 = vpop.trf.xlu0
        %v408 = vpop.trf.xlu0
        %v409 = vpop.trf.xlu0
        %v410 = vpop.trf.xlu0
        %v411 = vpop.trf.xlu0
        %v412 = vpop.trf.xlu0
        %v413 = vpop.trf.xlu0
        %v414 = vpop.trf.xlu0
        %v415 = vpop.trf.xlu0
        %v416 = vpop.trf.xlu0
        %v417 = vpop.trf.xlu0
        %v418 = vpop.trf.xlu0
        %v419 = vpop.trf.xlu0
        %v420 = vpop.trf.xlu0
        %v421 = vpop.trf.xlu0
        %422 = vst [vmem:[%s168] sm:$0x1] %v406
        %s424 = sshllo.u32 0, 2
        %v426 = vld [vmem:[#allocation2] sm:%s424]
        %s427 = sshllo.u32 0, 2
        %428 = vst [vmem:[%s141] sm:%s427] %v426
        %s430 = sshllo.u32 0, 2
        %v432 = vld [vmem:[#allocation5] sm:%s430]
        %s433 = sshllo.u32 0, 2
        %434 = vst [vmem:[%s148] sm:%s433] %v432
        %s435 = sand.u32 %s17, 1
        %s436 = sand.u32 %s17, 1
        %s437 = smul.addr %s436, 32
        %s438 = scalar_lea.vmem [#allocation1], %s437
        %s439 = sand.u32 %s27, 1
        %s440 = scalar_lea.sflag [#allocation4], %s439
        %s441 = sand.u32 %s27, 1
        %s442 = smul.addr %s441, 2
        %s443 = scalar_lea.vmem [#allocation3], %s442
        %s444 = sand.u32 %s55, 1
        %s445 = scalar_lea.sflag [#allocation7], %s444
        %s446 = sand.u32 %s55, 1
        %s447 = smul.addr %s446, 2
        %s448 = scalar_lea.vmem [#allocation6], %s447
        %s449 = smul.addr %s17, 32
        %s450 = scalar_lea.vmem %s1, %s449
        // Predicated region
        $region54: #{custom-call.5} parent=38 // pred_check
          _
        $region55: #{custom-call.5} parent=38 // pred_check_branch
          %452 = sbr.rel (0) target = $region57
        $region56: #{custom-call.5} parent=38 // pred_region
          // Predicated region
          $region58: #{custom-call.5} parent=56 // pred_check
            _
          $region59: #{custom-call.5} parent=56 // pred_check_branch
            %454 = sbr.rel (0) target = $region61
          $region60: #{custom-call.5} parent=56 // pred_region
            loop: start=0, step=1, limit=1
            $region62: #{custom-call.5} parent=60 // loop_pre_header
              _
            $region63: #{custom-call.5} parent=60 // loop_header
              %s456 = sphi 0, %s460
              %p457 = scmp.ge.s32.totalorder %s456, 1
              %s461 = sphi %s438, %s438
              %s462 = sphi %s450, %s450
            $region64: #{custom-call.5} parent=60 // loop_header_branch
              %459 = sbr.rel (%p457) target = $region68
            $region65: #{custom-call.5} parent=60 // loop_body
              %v463 = vld [vmem:[%s461] sm:$0xff]
              %464 = vst [vmem:[%s462] sm:$0xff] %v463
              %v465 = vld [vmem:[%s461 + $0x8] sm:$0xff]
              %466 = vst [vmem:[%s462 + $0x8] sm:$0xff] %v465
              %v467 = vld [vmem:[%s461 + $0x10] sm:$0xff]
              %468 = vst [vmem:[%s462 + $0x10] sm:$0xff] %v467
              %v469 = vld [vmem:[%s461 + $0x18] sm:$0xff]
              %470 = vst [vmem:[%s462 + $0x18] sm:$0xff] %v469
            $region66: #{custom-call.5} parent=60 // loop_footer
              %s460 = sadd.s32 1, %s456
            $region67: #{custom-call.5} parent=60 // loop_footer_branch
              %455 = sbr.rel target = $region63
            $region68: #{custom-call.5} parent=60 // loop_exit
              _
          $region61: #{custom-call.5} parent=56 // pred_fallthru
            _
          // Predicated region
          $region69: #{custom-call.5} parent=56 // pred_check
            _
          $region70: #{custom-call.5} parent=56 // pred_check_branch
            %472 = sbr.rel target = $region72
          $region71: #{custom-call.5} parent=56 // pred_region
            _
          $region72: #{custom-call.5} parent=56 // pred_fallthru
            _
        $region57: #{custom-call.5} parent=38 // pred_fallthru
          _
        %473 = vnop
        // Predicated region
        $region73: #{custom-call.5} parent=38 // pred_check
          %p474 = pneg %p37
        $region74: #{custom-call.5} parent=38 // pred_check_branch
          %476 = sbr.rel (%p474) target = $region76
        $region75: #{custom-call.5} parent=38 // pred_region
          %s477 = sshrl.u32 %s17, 3
          %s479 = ssub.s32 32, 32
          %480 = vsyncadd %s440, %s479
          %s481 = smul.addr %s477, 32
          %s482 = scalar_lea.hbm %s2, %s481
          %s484 = sshll.u32 %s443, 4
          %s485 = int_to_ptr.vmem [resolvable:$true] %s484
          %487 = dma.vmem_to_hbm [thread:$0]  %s485, 32, %s482, %s440
        $region76: #{custom-call.5} parent=38 // pred_fallthru
          _
        // Predicated region
        $region77: #{custom-call.5} parent=38 // pred_check
          %p488 = pneg %p65
        $region78: #{custom-call.5} parent=38 // pred_check_branch
          %490 = sbr.rel (%p488) target = $region80
        $region79: #{custom-call.5} parent=38 // pred_region
          %s491 = sshrl.u32 %s17, 3
          %s493 = ssub.s32 32, 32
          %494 = vsyncadd %s445, %s493
          %s495 = smul.addr %s491, 32
          %s496 = scalar_lea.hbm %s3, %s495
          %s498 = sshll.u32 %s448, 4
          %s499 = int_to_ptr.vmem [resolvable:$true] %s498
          %501 = dma.vmem_to_hbm [thread:$0]  %s499, 32, %s496, %s445
        $region80: #{custom-call.5} parent=38 // pred_fallthru
          _
      $region39: #{custom-call.5} parent=5 // pred_fallthru
        _
      %p502 = scmp.le.s32.totalorder 2, %s12
      // Predicated region
      $region81: #{custom-call.5} parent=5 // pred_check
        %p503 = pneg %p502
      $region82: #{custom-call.5} parent=5 // pred_check_branch
        %505 = sbr.rel (%p503) target = $region84
      $region83: #{custom-call.5} parent=5 // pred_region
        %s506 = ssub.s32 %s12, 2
        %s507 = sand.u32 %s18, 1
        %s508 = sand.u32 %s18, 1
        %s509 = smul.addr %s508, 32
        %s510 = scalar_lea.vmem [#allocation1], %s509
        // Predicated region
        $region85: #{custom-call.5} parent=83 // pred_check
          %p511 = pneg %p43
        $region86: #{custom-call.5} parent=83 // pred_check_branch
          %513 = sbr.rel (%p511) target = $region88
        $region87: #{custom-call.5} parent=83 // pred_region
          %s514 = sand.u32 %s28, 1
          %s515 = scalar_lea.sflag [#allocation4], %s514
          %s516 = sand.u32 %s28, 1
          %s517 = smul.addr %s516, 2
          %s518 = scalar_lea.vmem [#allocation3], %s517
          %519 = dma.done %s515, 32
        $region88: #{custom-call.5} parent=83 // pred_fallthru
          _
        // Predicated region
        $region89: #{custom-call.5} parent=83 // pred_check
          %p520 = pneg %p71
        $region90: #{custom-call.5} parent=83 // pred_check_branch
          %522 = sbr.rel (%p520) target = $region92
        $region91: #{custom-call.5} parent=83 // pred_region
          %s523 = sand.u32 %s56, 1
          %s524 = scalar_lea.sflag [#allocation7], %s523
          %s525 = sand.u32 %s56, 1
          %s526 = smul.addr %s525, 2
          %s527 = scalar_lea.vmem [#allocation6], %s526
          %528 = dma.done %s524, 32
        $region92: #{custom-call.5} parent=83 // pred_fallthru
          _
      $region84: #{custom-call.5} parent=5 // pred_fallthru
        _
    $region6: #{custom-call.5} parent=1 // loop_footer
      %s16 = sadd.s32 1, %s12
    $region7: #{custom-call.5} parent=1 // loop_footer_branch
      %11 = sbr.rel target = $region3
    $region8: #{custom-call.5} parent=1 // loop_exit
      _
    %529 = vsyncpa [#allocation4], 1
    %s530 = scalar_lea.sflag [#allocation4], 1
    %531 = vsyncpa %s530, 1
    %532 = vsyncpa [#allocation7], 1
    %s533 = scalar_lea.sflag [#allocation7], 1
    %534 = vsyncpa %s533, 1

// kernel: mcr_gan_loss_forward.1
$region0: #{mcr_gan_loss_forward.1}
  #allocation0 [shape = 'u32[]', space=smem, size = 0x4, offset = 0x4, fixed_abs, tag = 'smem constant byte address 0x4 - core index']
  #allocation1 [shape = 'u32[144,128]{1,0:T(1,128)}', space=vmem, size = 0x12000, scoped, tag = 'internal scratch']
  #allocation2 [shape = 'f32[32,32]{1,0:T(8,128)}', space=vmem, size = 0x4000, scoped, tag = 'scratch operand']
  #allocation3 [shape = 'f32[32,32]{1,0:T(8,128)}', space=vmem, size = 0x4000, scoped, tag = 'scratch operand']
  %s0 = inlined_call_operand.vmem [shape: f32[64,32], index: 0, kind: input, shape index: {}]
  %s1 = inlined_call_operand.vmem [shape: f32[64,32], index: 1, kind: input, shape index: {}]
  %s2 = inlined_call_operand.vmem [shape: f32[2,2,32,32], index: 2, kind: output, shape index: {}]
  %s3 = sld [smem:[#allocation0]]
  $region49: #{mcr_gan_loss_forward.1} parent=0
    _
  %s5 = ssub.s32 1, %s3
  %s6 = scalar_select 0, %s5, %s3
  loop: start=0, step=1, limit=4
  $region2: #{mcr_gan_loss_forward.1} parent=0 // loop_pre_header
    _
  $region3: #{mcr_gan_loss_forward.1} parent=0 // loop_header
    %s8 = sphi 0, %s12
    %p9 = scmp.ge.s32.totalorder %s8, 4
    %s15 = sphi 0, %s27
    %s16 = sphi 0, %s23
    %s17 = sphi 0, %s15
    %s18 = sphi 0, %s16
    %s19 = sphi 0, %s17
    %s20 = sphi 0, %s18
    %s32 = sphi 0, %s34
    %s35 = sphi 0, %s32
    %s36 = sphi 0, %s35
    %s52 = sphi 0, %s36
    %s60 = sphi 0, %s62
    %s63 = sphi 0, %s60
    %s64 = sphi 0, %s63
    %s80 = sphi 0, %s64
    %s86 = sphi 0, %s88
    %s89 = sphi 0, %s86
    %s90 = sphi 0, %s89
    %s106 = sphi 0, %s90
  $region4: #{mcr_gan_loss_forward.1} parent=0 // loop_header_branch
    %11 = sbr.rel (%p9) target = $region8
  $region5: #{mcr_gan_loss_forward.1} parent=0 // loop_body
    %s13 = ssub.s32 %s8, 1
    %s14 = ssub.s32 %s8, 2
    %s21 = sadd.s32 1, %s16
    %p22 = scmp.ge.s32.totalorder %s21, 1
    %s23 = scalar_select %p22, 0, %s21
    %s24 = sadd.s32 1, %s15
    %s25 = scalar_select %p22, %s24, %s15
    %p26 = scmp.ge.s32.totalorder %s25, 2
    %s27 = scalar_select %p26, 0, %s25
    %s28 = sadd.s32 %s15, %s16
    %s29 = sadd.s32 %s27, %s23
    %s30 = ssub.s32 %s28, %s29
    %p31 = scmp.eq.s32.totalorder %s30, 0
    %s33 = sadd.s32 %s32, 1
    %s34 = scalar_select %p31, %s32, %s33
    %p37 = pneg %p31
    %p38 = scmp.eq.s32.totalorder %s8, 1
    %p39 = por %p37, %p38
    %p40 = scmp.ne.s32.totalorder %s32, %s35
    %p41 = scmp.eq.s32.totalorder %s8, 0
    %p42 = por %p40, %p41
    %p43 = scmp.ne.s32.totalorder %s32, %s35
    %p44 = scmp.eq.s32.totalorder %s13, 1
    %p45 = por %p43, %p44
    %p46 = scmp.ne.s32.totalorder %s35, %s36
    %p47 = scmp.eq.s32.totalorder %s13, 0
    %p48 = por %p46, %p47
    %p49 = scmp.ne.s32.totalorder %s35, %s36
    %p50 = scmp.eq.s32.totalorder %s14, 1
    %p51 = por %p49, %p50
    %p53 = scmp.ne.s32.totalorder %s36, %s52
    %p54 = scmp.eq.s32.totalorder %s14, 0
    %p55 = por %p53, %p54
    %s56 = sadd.s32 %s15, %s16
    %s57 = sadd.s32 %s27, %s23
    %s58 = ssub.s32 %s56, %s57
    %p59 = scmp.eq.s32.totalorder %s58, 0
    %s61 = sadd.s32 %s60, 1
    %s62 = scalar_select %p59, %s60, %s61
    %p65 = pneg %p59
    %p66 = scmp.eq.s32.totalorder %s8, 1
    %p67 = por %p65, %p66
    %p68 = scmp.ne.s32.totalorder %s60, %s63
    %p69 = scmp.eq.s32.totalorder %s8, 0
    %p70 = por %p68, %p69
    %p71 = scmp.ne.s32.totalorder %s60, %s63
    %p72 = scmp.eq.s32.totalorder %s13, 1
    %p73 = por %p71, %p72
    %p74 = scmp.ne.s32.totalorder %s63, %s64
    %p75 = scmp.eq.s32.totalorder %s13, 0
    %p76 = por %p74, %p75
    %p77 = scmp.ne.s32.totalorder %s63, %s64
    %p78 = scmp.eq.s32.totalorder %s14, 1
    %p79 = por %p77, %p78
    %p81 = scmp.ne.s32.totalorder %s64, %s80
    %p82 = scmp.eq.s32.totalorder %s14, 0
    %p83 = por %p81, %p82
    %s84 = ssub.s32 %s15, %s27
    %p85 = scmp.eq.s32.totalorder %s84, 0
    %s87 = sadd.s32 %s86, 1
    %s88 = scalar_select %p85, %s86, %s87
    %p91 = pneg %p85
    %p92 = scmp.eq.s32.totalorder %s8, 1
    %p93 = por %p91, %p92
    %p94 = scmp.ne.s32.totalorder %s86, %s89
    %p95 = scmp.eq.s32.totalorder %s8, 0
    %p96 = por %p94, %p95
    %p97 = scmp.ne.s32.totalorder %s86, %s89
    %p98 = scmp.eq.s32.totalorder %s13, 1
    %p99 = por %p97, %p98
    %p100 = scmp.ne.s32.totalorder %s89, %s90
    %p101 = scmp.eq.s32.totalorder %s13, 0
    %p102 = por %p100, %p101
    %p103 = scmp.ne.s32.totalorder %s89, %s90
    %p104 = scmp.eq.s32.totalorder %s14, 1
    %p105 = por %p103, %p104
    %p107 = scmp.ne.s32.totalorder %s90, %s106
    %p108 = scmp.eq.s32.totalorder %s14, 0
    %p109 = por %p107, %p108
    %p110 = scmp.le.s32.totalorder 1, %s8
    %p111 = scmp.lt.s32.totalorder %s8, 3
    %p112 = pnand %p110, %p111
    %p113 = pneg %p112
    // Predicated region
    $region9: #{mcr_gan_loss_forward.1} parent=5 // pred_check
      _
    $region10: #{mcr_gan_loss_forward.1} parent=5 // pred_check_branch
      %115 = sbr.rel (%p112) target = $region12
    $region11: #{mcr_gan_loss_forward.1} parent=5 // pred_region
      %s116 = ssub.s32 %s8, 1
    $region12: #{mcr_gan_loss_forward.1} parent=5 // pred_fallthru
      _
    %p117 = scmp.lt.s32.totalorder %s8, 2
    // Predicated region
    $region13: #{mcr_gan_loss_forward.1} parent=5 // pred_check
      %p118 = pneg %p117
    $region14: #{mcr_gan_loss_forward.1} parent=5 // pred_check_branch
      %120 = sbr.rel (%p118) target = $region16
    $region15: #{mcr_gan_loss_forward.1} parent=5 // pred_region
      // Predicated region
      $region17: #{mcr_gan_loss_forward.1} parent=15 // pred_check
        %p121 = pneg %p42
      $region18: #{mcr_gan_loss_forward.1} parent=15 // pred_check_branch
        %123 = sbr.rel (%p121) target = $region20
      $region19: #{mcr_gan_loss_forward.1} parent=15 // pred_region
        %s124 = sadd.s32 %s15, %s16
        %s125 = smul.u32 4, %s124
        %p126 = scmp.lt.s32.totalorder %s125, 7
        %s127 = scalar_select %p126, %s125, 7
        %s128 = smul.addr %s127, 8
        %s129 = scalar_lea.vmem %s0, %s128
        %s130 = sadd.s32 %s15, %s16
        %s131 = smul.u32 4, %s130
      $region20: #{mcr_gan_loss_forward.1} parent=15 // pred_fallthru
        _
      // Predicated region
      $region21: #{mcr_gan_loss_forward.1} parent=15 // pred_check
        %p132 = pneg %p70
      $region22: #{mcr_gan_loss_forward.1} parent=15 // pred_check_branch
        %134 = sbr.rel (%p132) target = $region24
      $region23: #{mcr_gan_loss_forward.1} parent=15 // pred_region
        %s135 = sadd.s32 %s15, %s16
        %s136 = smul.u32 4, %s135
        %p137 = scmp.lt.s32.totalorder %s136, 7
        %s138 = scalar_select %p137, %s136, 7
        %s139 = smul.addr %s138, 8
        %s140 = scalar_lea.vmem %s1, %s139
        %s141 = sadd.s32 %s15, %s16
        %s142 = smul.u32 4, %s141
      $region24: #{mcr_gan_loss_forward.1} parent=15 // pred_fallthru
        _
    $region16: #{mcr_gan_loss_forward.1} parent=5 // pred_fallthru
      _
    %p143 = scmp.le.s32.totalorder 1, %s8
    %p144 = scmp.lt.s32.totalorder %s8, 3
    %p145 = pnand %p143, %p144
    %p146 = pneg %p145
    // Predicated region
    $region25: #{mcr_gan_loss_forward.1} parent=5 // pred_check
      _
    $region26: #{mcr_gan_loss_forward.1} parent=5 // pred_check_branch
      %148 = sbr.rel (%p145) target = $region28
    $region27: #{mcr_gan_loss_forward.1} parent=5 // pred_region
      %s149 = ssub.s32 %s8, 1
      %s150 = sadd.s32 %s17, %s18
      %s151 = smul.u32 4, %s150
      %p152 = scmp.lt.s32.totalorder %s151, 7
      %s153 = scalar_select %p152, %s151, 7
      %s154 = smul.addr %s153, 8
      %s155 = scalar_lea.vmem %s0, %s154
      %p156 = pneg %p48
      %p157 = pneg %p45
      %s158 = sadd.s32 %s17, %s18
      %s159 = smul.u32 4, %s158
      %p160 = scmp.lt.s32.totalorder %s159, 7
      %s161 = scalar_select %p160, %s159, 7
      %s162 = smul.addr %s161, 8
      %s163 = scalar_lea.vmem %s1, %s162
      %p164 = pneg %p76
      %p165 = pneg %p73
      %p166 = pneg %p102
      %p167 = pneg %p99
      %p168 = scmp.lt.s32.totalorder %s17, 1
      %s169 = scalar_select %p168, %s17, 1
      %s170 = smul.addr %s169, 8
      %s171 = smul.addr %s170, 8
      %s172 = scalar_lea.vmem %s2, %s171
      %s173 = sadd.s32 %s17, %s18
      %s174 = smul.u32 4, %s173
      %p175 = scmp.lt.s32.totalorder %s174, 7
      %s176 = scalar_select %p175, %s174, 7
      %s177 = smul.addr %s176, 8
      %s178 = scalar_lea.vmem %s0, %s177
      %s179 = sadd.s32 %s17, %s18
      %s180 = smul.u32 4, %s179
      %s181 = sadd.s32 %s17, %s18
      %s182 = smul.u32 4, %s181
      %p183 = scmp.lt.s32.totalorder %s182, 7
      %s184 = scalar_select %p183, %s182, 7
      %s185 = smul.addr %s184, 8
      %s186 = scalar_lea.vmem %s1, %s185
      %s187 = sadd.s32 %s17, %s18
      %s188 = smul.u32 4, %s187
      %p189 = scmp.lt.s32.totalorder %s17, 1
      %s190 = scalar_select %p189, %s17, 1
      %s191 = smul.addr %s190, 8
      %s192 = smul.addr %s191, 8
      %s193 = scalar_lea.vmem %s2, %s192
      %p194 = scmp.eq.s32.totalorder %s18, 0
      // Predicated region
      $region29: #{mcr_gan_loss_forward.1} parent=27 // pred_check
        %p195 = pneg %p194
      $region30: #{mcr_gan_loss_forward.1} parent=27 // pred_check_branch
        %197 = sbr.rel (%p195) target = $region32
      $region31: #{mcr_gan_loss_forward.1} parent=27 // pred_region
        %vm198 = vcmask 261120
        %199 = vst.msk [vmem:[#allocation2] sm:$0xff] %vm198, 0.0
        %200 = vst.msk [vmem:[#allocation2 + $0x8] sm:$0xff] %vm198, 0.0
        %201 = vst.msk [vmem:[#allocation2 + $0x10] sm:$0xff] %vm198, 0.0
        %202 = vst.msk [vmem:[#allocation2 + $0x18] sm:$0xff] %vm198, 0.0
        %203 = vst.msk [vmem:[#allocation3] sm:$0xff] %vm198, 0.0
        %204 = vst.msk [vmem:[#allocation3 + $0x8] sm:$0xff] %vm198, 0.0
        %205 = vst.msk [vmem:[#allocation3 + $0x10] sm:$0xff] %vm198, 0.0
        %206 = vst.msk [vmem:[#allocation3 + $0x18] sm:$0xff] %vm198, 0.0
      $region32: #{mcr_gan_loss_forward.1} parent=27 // pred_fallthru
        _
      %v207 = vld [vmem:[%s178] sm:$0xff]
      %v208 = vld [vmem:[%s178 + $0x8] sm:$0xff]
      %v209 = vld [vmem:[%s178 + $0x10] sm:$0xff]
      %v210 = vld [vmem:[%s178 + $0x18] sm:$0xff]
      %v211 = vld [vmem:[%s186] sm:$0xff]
      %v212 = vld [vmem:[%s186 + $0x8] sm:$0xff]
      %v213 = vld [vmem:[%s186 + $0x10] sm:$0xff]
      %v214 = vld [vmem:[%s186 + $0x18] sm:$0xff]
      %v215 = vld [vmem:[#allocation2] sm:$0xff]
      %v216 = vld [vmem:[#allocation2 + $0x8] sm:$0xff]
      %v217 = vld [vmem:[#allocation2 + $0x10] sm:$0xff]
      %v218 = vld [vmem:[#allocation2 + $0x18] sm:$0xff]
      %219 = vxpose.xlu0.b32.start [1/16] %v207, 128
      %220 = vxpose.xlu0.b32.cont [2/16] %v208, 128
      %221 = vxpose.xlu0.b32.cont [3/16] %v209, 128
      %222 = vxpose.xlu0.b32.cont [4/16] %v210, 128
      %223 = vxpose.xlu0.b32.cont [5/16] 0.0, 128
      %224 = vxpose.xlu0.b32.cont [6/16] 0.0, 128
      %225 = vxpose.xlu0.b32.cont [7/16] 0.0, 128
      %226 = vxpose.xlu0.b32.cont [8/16] 0.0, 128
      %227 = vxpose.xlu0.b32.cont [9/16] 0.0, 128
      %228 = vxpose.xlu0.b32.cont [10/16] 0.0, 128
      %229 = vxpose.xlu0.b32.cont [11/16] 0.0, 128
      %230 = vxpose.xlu0.b32.cont [12/16] 0.0, 128
      %231 = vxpose.xlu0.b32.cont [13/16] 0.0, 128
      %232 = vxpose.xlu0.b32.cont [14/16] 0.0, 128
      %233 = vxpose.xlu0.b32.cont [15/16] 0.0, 128
      %234 = vxpose.xlu0.b32.end [16/16] 0.0, 128
      %v235 = vpop.trf.xlu0
      %v236 = vpop.trf.xlu0
      %v237 = vpop.trf.xlu0
      %v238 = vpop.trf.xlu0
      %v239 = vpop.trf.xlu0
      %v240 = vpop.trf.xlu0
      %v241 = vpop.trf.xlu0
      %v242 = vpop.trf.xlu0
      %v243 = vpop.trf.xlu0
      %v244 = vpop.trf.xlu0
      %v245 = vpop.trf.xlu0
      %v246 = vpop.trf.xlu0
      %v247 = vpop.trf.xlu0
      %v248 = vpop.trf.xlu0
      %v249 = vpop.trf.xlu0
      %v250 = vpop.trf.xlu0
      %vm251 = vcmask 261120
      %v253 = vsel %vm251, %v235, 0
      %v256 = vsel %vm251, %v236, 0
      %v259 = vsel %vm251, %v237, 0
      %v262 = vsel %vm251, %v238, 0
      %264 = vmatprep.subr.mxu0 0.0
      %265 = vmatpush1.msra.mxu0 %v207
      %266 = vmatprep.subr.mxu0 0.0
      %267 = vmatpush1.msra.mxu0 %v208
      %268 = vmatprep.subr.mxu0 0.0
      %269 = vmatpush1.msra.mxu0 %v209
      %270 = vmatprep.subr.mxu0 0.0
      %271 = vmatpush1.msra.mxu0 %v210
      %272 = vmatprep.subr.mxu0 0.0
      %273 = vmatpush1.msra.mxu0 0.0
      %274 = vmatprep.subr.mxu0 0.0
      %275 = vmatpush1.msra.mxu0 0.0
      %276 = vmatprep.subr.mxu0 0.0
      %277 = vmatpush1.msra.mxu0 0.0
      %278 = vmatprep.subr.mxu0 0.0
      %279 = vmatpush1.msra.mxu0 0.0
      %280 = vmatprep.subr.mxu0 0.0
      %281 = vmatpush1.msra.mxu0 0.0
      %282 = vmatprep.subr.mxu0 0.0
      %283 = vmatpush1.msra.mxu0 0.0
      %284 = vmatprep.subr.mxu0 0.0
      %285 = vmatpush1.msra.mxu0 0.0
      %286 = vmatprep.subr.mxu0 0.0
      %287 = vmatpush1.msra.mxu0 0.0
      %288 = vmatprep.subr.mxu0 0.0
      %289 = vmatpush1.msra.mxu0 0.0
      %290 = vmatprep.subr.mxu0 0.0
      %291 = vmatpush1.msra.mxu0 0.0
      %292 = vmatprep.subr.mxu0 0.0
      %293 = vmatpush1.msra.mxu0 0.0
      %294 = vmatprep.subr.mxu0 0.0
      %295 = vmatpush1.msra.mxu0 0.0
      %296 = vmatprep.subr.mxu0 0.0
      %297 = vmatpush1.msra.mxu0 0.0
      %298 = vmatprep.subr.mxu0 0.0
      %299 = vmatpush1.msra.mxu0 0.0
      %300 = vmatprep.subr.mxu0 0.0
      %301 = vmatpush1.msra.mxu0 0.0
      %302 = vmatprep.subr.mxu0 0.0
      %303 = vmatpush1.msra.mxu0 0.0
      %304 = vmatprep.subr.mxu0 0.0
      %305 = vmatpush1.msra.mxu0 0.0
      %306 = vmatprep.subr.mxu0 0.0
      %307 = vmatpush1.msra.mxu0 0.0
      %308 = vmatprep.subr.mxu0 0.0
      %309 = vmatpush1.msra.mxu0 0.0
      %310 = vmatprep.subr.mxu0 0.0
      %311 = vmatpush1.msra.mxu0 0.0
      %312 = vmatprep.subr.mxu0 0.0
      %313 = vmatpush1.msra.mxu0 0.0
      %314 = vmatprep.subr.mxu0 0.0
      %315 = vmatpush1.msra.mxu0 0.0
      %316 = vmatprep.subr.mxu0 0.0
      %317 = vmatpush1.msra.mxu0 0.0
      %318 = vmatprep.subr.mxu0 0.0
      %319 = vmatpush1.msra.mxu0 0.0
      %320 = vmatprep.subr.mxu0 0.0
      %321 = vmatpush1.msra.mxu0 0.0
      %322 = vmatprep.subr.mxu0 0.0
      %323 = vmatpush1.msra.mxu0 0.0
      %324 = vmatprep.subr.mxu0 0.0
      %325 = vmatpush1.msra.mxu0 0.0
      %326 = vmatprep.subr.mxu0 0.0
      %327 = vmatpush1.msra.mxu0 0.0
      %328 = vmatprep.mubr.f32.mxu0 0.0
      %329 = vmatmul.mubr.f32.gmra.mrb[0].mxu0 %v253
      %v330 = vpop.f32.mrb[0].mxu0
      %v331 = vadd.f32 0.0, %v330
      %v332 = vpop.f32.mrb[0].mxu0
      %333 = vmatprep.mubr.f32.mxu0 0.0
      %334 = vmatmul.mubr.f32.gmra.mrb[0].mxu0 %v256
      %v335 = vpop.f32.mrb[0].mxu0
      %v336 = vadd.f32 0.0, %v335
      %v337 = vpop.f32.mrb[0].mxu0
      %338 = vmatprep.mubr.f32.mxu0 0.0
      %339 = vmatmul.mubr.f32.gmra.mrb[0].mxu0 %v259
      %v340 = vpop.f32.mrb[0].mxu0
      %v341 = vadd.f32 0.0, %v340
      %v342 = vpop.f32.mrb[0].mxu0
      %343 = vmatprep.mubr.f32.mxu0 0.0
      %344 = vmatmul.mubr.f32.gmra.mrb[0].mxu0 %v262
      %v345 = vpop.f32.mrb[0].mxu0
      %v346 = vadd.f32 0.0, %v345
      %v347 = vpop.f32.mrb[0].mxu0
      %348 = vdwg.mxu0
      %v349 = vadd.f32 %v215, %v331
      %v350 = vadd.f32 %v216, %v336
      %v351 = vadd.f32 %v217, %v341
      %v352 = vadd.f32 %v218, %v346
      %353 = vst.msk [vmem:[#allocation2] sm:$0xff] %vm251, %v349
      %354 = vst.msk [vmem:[#allocation2 + $0x8] sm:$0xff] %vm251, %v350
      %355 = vst.msk [vmem:[#allocation2 + $0x10] sm:$0xff] %vm251, %v351
      %356 = vst.msk [vmem:[#allocation2 + $0x18] sm:$0xff] %vm251, %v352
      %v357 = vld [vmem:[#allocation3] sm:$0xff]
      %v358 = vld [vmem:[#allocation3 + $0x8] sm:$0xff]
      %v359 = vld [vmem:[#allocation3 + $0x10] sm:$0xff]
      %v360 = vld [vmem:[#allocation3 + $0x18] sm:$0xff]
      %361 = vxpose.xlu0.b32.start [1/16] %v211, 128
      %362 = vxpose.xlu0.b32.cont [2/16] %v212, 128
      %363 = vxpose.xlu0.b32.cont [3/16] %v213, 128
      %364 = vxpose.xlu0.b32.cont [4/16] %v214, 128
      %365 = vxpose.xlu0.b32.cont [5/16] 0.0, 128
      %366 = vxpose.xlu0.b32.cont [6/16] 0.0, 128
      %367 = vxpose.xlu0.b32.cont [7/16] 0.0, 128
      %368 = vxpose.xlu0.b32.cont [8/16] 0.0, 128
      %369 = vxpose.xlu0.b32.cont [9/16] 0.0, 128
      %370 = vxpose.xlu0.b32.cont [10/16] 0.0, 128
      %371 = vxpose.xlu0.b32.cont [11/16] 0.0, 128
      %372 = vxpose.xlu0.b32.cont [12/16] 0.0, 128
      %373 = vxpose.xlu0.b32.cont [13/16] 0.0, 128
      %374 = vxpose.xlu0.b32.cont [14/16] 0.0, 128
      %375 = vxpose.xlu0.b32.cont [15/16] 0.0, 128
      %376 = vxpose.xlu0.b32.end [16/16] 0.0, 128
      %v377 = vpop.trf.xlu0
      %v378 = vpop.trf.xlu0
      %v379 = vpop.trf.xlu0
      %v380 = vpop.trf.xlu0
      %v381 = vpop.trf.xlu0
      %v382 = vpop.trf.xlu0
      %v383 = vpop.trf.xlu0
      %v384 = vpop.trf.xlu0
      %v385 = vpop.trf.xlu0
      %v386 = vpop.trf.xlu0
      %v387 = vpop.trf.xlu0
      %v388 = vpop.trf.xlu0
      %v389 = vpop.trf.xlu0
      %v390 = vpop.trf.xlu0
      %v391 = vpop.trf.xlu0
      %v392 = vpop.trf.xlu0
      %v394 = vsel %vm251, %v377, 0
      %v397 = vsel %vm251, %v378, 0
      %v400 = vsel %vm251, %v379, 0
      %v403 = vsel %vm251, %v380, 0
      %405 = vmatprep.subr.mxu0 0.0
      %406 = vmatpush1.msra.mxu0 %v211
      %407 = vmatprep.subr.mxu0 0.0
      %408 = vmatpush1.msra.mxu0 %v212
      %409 = vmatprep.subr.mxu0 0.0
      %410 = vmatpush1.msra.mxu0 %v213
      %411 = vmatprep.subr.mxu0 0.0
      %412 = vmatpush1.msra.mxu0 %v214
      %413 = vmatprep.subr.mxu0 0.0
      %414 = vmatpush1.msra.mxu0 0.0
      %415 = vmatprep.subr.mxu0 0.0
      %416 = vmatpush1.msra.mxu0 0.0
      %417 = vmatprep.subr.mxu0 0.0
      %418 = vmatpush1.msra.mxu0 0.0
      %419 = vmatprep.subr.mxu0 0.0
      %420 = vmatpush1.msra.mxu0 0.0
      %421 = vmatprep.subr.mxu0 0.0
      %422 = vmatpush1.msra.mxu0 0.0
      %423 = vmatprep.subr.mxu0 0.0
      %424 = vmatpush1.msra.mxu0 0.0
      %425 = vmatprep.subr.mxu0 0.0
      %426 = vmatpush1.msra.mxu0 0.0
      %427 = vmatprep.subr.mxu0 0.0
      %428 = vmatpush1.msra.mxu0 0.0
      %429 = vmatprep.subr.mxu0 0.0
      %430 = vmatpush1.msra.mxu0 0.0
      %431 = vmatprep.subr.mxu0 0.0
      %432 = vmatpush1.msra.mxu0 0.0
      %433 = vmatprep.subr.mxu0 0.0
      %434 = vmatpush1.msra.mxu0 0.0
      %435 = vmatprep.subr.mxu0 0.0
      %436 = vmatpush1.msra.mxu0 0.0
      %437 = vmatprep.subr.mxu0 0.0
      %438 = vmatpush1.msra.mxu0 0.0
      %439 = vmatprep.subr.mxu0 0.0
      %440 = vmatpush1.msra.mxu0 0.0
      %441 = vmatprep.subr.mxu0 0.0
      %442 = vmatpush1.msra.mxu0 0.0
      %443 = vmatprep.subr.mxu0 0.0
      %444 = vmatpush1.msra.mxu0 0.0
      %445 = vmatprep.subr.mxu0 0.0
      %446 = vmatpush1.msra.mxu0 0.0
      %447 = vmatprep.subr.mxu0 0.0
      %448 = vmatpush1.msra.mxu0 0.0
      %449 = vmatprep.subr.mxu0 0.0
      %450 = vmatpush1.msra.mxu0 0.0
      %451 = vmatprep.subr.mxu0 0.0
      %452 = vmatpush1.msra.mxu0 0.0
      %453 = vmatprep.subr.mxu0 0.0
      %454 = vmatpush1.msra.mxu0 0.0
      %455 = vmatprep.subr.mxu0 0.0
      %456 = vmatpush1.msra.mxu0 0.0
      %457 = vmatprep.subr.mxu0 0.0
      %458 = vmatpush1.msra.mxu0 0.0
      %459 = vmatprep.subr.mxu0 0.0
      %460 = vmatpush1.msra.mxu0 0.0
      %461 = vmatprep.subr.mxu0 0.0
      %462 = vmatpush1.msra.mxu0 0.0
      %463 = vmatprep.subr.mxu0 0.0
      %464 = vmatpush1.msra.mxu0 0.0
      %465 = vmatprep.subr.mxu0 0.0
      %466 = vmatpush1.msra.mxu0 0.0
      %467 = vmatprep.subr.mxu0 0.0
      %468 = vmatpush1.msra.mxu0 0.0
      %469 = vmatprep.mubr.f32.mxu0 0.0
      %470 = vmatmul.mubr.f32.gmra.mrb[0].mxu0 %v394
      %v471 = vpop.f32.mrb[0].mxu0
      %v472 = vadd.f32 0.0, %v471
      %v473 = vpop.f32.mrb[0].mxu0
      %474 = vmatprep.mubr.f32.mxu0 0.0
      %475 = vmatmul.mubr.f32.gmra.mrb[0].mxu0 %v397
      %v476 = vpop.f32.mrb[0].mxu0
      %v477 = vadd.f32 0.0, %v476
      %v478 = vpop.f32.mrb[0].mxu0
      %479 = vmatprep.mubr.f32.mxu0 0.0
      %480 = vmatmul.mubr.f32.gmra.mrb[0].mxu0 %v400
      %v481 = vpop.f32.mrb[0].mxu0
      %v482 = vadd.f32 0.0, %v481
      %v483 = vpop.f32.mrb[0].mxu0
      %484 = vmatprep.mubr.f32.mxu0 0.0
      %485 = vmatmul.mubr.f32.gmra.mrb[0].mxu0 %v403
      %v486 = vpop.f32.mrb[0].mxu0
      %v487 = vadd.f32 0.0, %v486
      %v488 = vpop.f32.mrb[0].mxu0
      %489 = vdwg.mxu0
      %v490 = vadd.f32 %v357, %v472
      %v491 = vadd.f32 %v358, %v477
      %v492 = vadd.f32 %v359, %v482
      %v493 = vadd.f32 %v360, %v487
      %494 = vst.msk [vmem:[#allocation3] sm:$0xff] %vm251, %v490
      %495 = vst.msk [vmem:[#allocation3 + $0x8] sm:$0xff] %vm251, %v491
      %496 = vst.msk [vmem:[#allocation3 + $0x10] sm:$0xff] %vm251, %v492
      %497 = vst.msk [vmem:[#allocation3 + $0x18] sm:$0xff] %vm251, %v493
      // Predicated region
      $region33: #{mcr_gan_loss_forward.1} parent=27 // pred_check
        %p498 = pneg %p194
      $region34: #{mcr_gan_loss_forward.1} parent=27 // pred_check_branch
        %500 = sbr.rel (%p498) target = $region36
      $region35: #{mcr_gan_loss_forward.1} parent=27 // pred_region
        %v501 = vld [vmem:[#allocation2] sm:$0xff]
        %v502 = vld [vmem:[#allocation2 + $0x8] sm:$0xff]
        %v503 = vld [vmem:[#allocation2 + $0x10] sm:$0xff]
        %v504 = vld [vmem:[#allocation2 + $0x18] sm:$0xff]
        %505 = vst.msk [vmem:[%s193] sm:$0xff] %vm251, %v501
        %506 = vst.msk [vmem:[%s193 + $0x8] sm:$0xff] %vm251, %v502
        %507 = vst.msk [vmem:[%s193 + $0x10] sm:$0xff] %vm251, %v503
        %508 = vst.msk [vmem:[%s193 + $0x18] sm:$0xff] %vm251, %v504
        %v509 = vld [vmem:[#allocation3] sm:$0xff]
        %v510 = vld [vmem:[#allocation3 + $0x8] sm:$0xff]
        %v511 = vld [vmem:[#allocation3 + $0x10] sm:$0xff]
        %v512 = vld [vmem:[#allocation3 + $0x18] sm:$0xff]
        %s513 = scalar_lea.vmem %s193, 32
        %514 = vst.msk [vmem:[%s513] sm:$0xff] %vm251, %v509
        %515 = vst.msk [vmem:[%s513 + $0x8] sm:$0xff] %vm251, %v510
        %516 = vst.msk [vmem:[%s513 + $0x10] sm:$0xff] %vm251, %v511
        %517 = vst.msk [vmem:[%s513 + $0x18] sm:$0xff] %vm251, %v512
      $region36: #{mcr_gan_loss_forward.1} parent=27 // pred_fallthru
        _
      %p518 = scmp.lt.s32.totalorder %s17, 1
      %s519 = scalar_select %p518, %s17, 1
      %s520 = smul.addr %s519, 8
      %s521 = smul.addr %s520, 8
      %s522 = scalar_lea.vmem %s2, %s521
      // Predicated region
      $region37: #{mcr_gan_loss_forward.1} parent=27 // pred_check
        %p523 = pneg %p99
      $region38: #{mcr_gan_loss_forward.1} parent=27 // pred_check_branch
        %525 = sbr.rel (%p523) target = $region40
      $region39: #{mcr_gan_loss_forward.1} parent=27 // pred_region
        _
      $region40: #{mcr_gan_loss_forward.1} parent=27 // pred_fallthru
        _
    $region28: #{mcr_gan_loss_forward.1} parent=5 // pred_fallthru
      _
    %p526 = scmp.le.s32.totalorder 2, %s8
    // Predicated region
    $region41: #{mcr_gan_loss_forward.1} parent=5 // pred_check
      %p527 = pneg %p526
    $region42: #{mcr_gan_loss_forward.1} parent=5 // pred_check_branch
      %529 = sbr.rel (%p527) target = $region44
    $region43: #{mcr_gan_loss_forward.1} parent=5 // pred_region
      %s530 = ssub.s32 %s8, 2
      // Predicated region
      $region45: #{mcr_gan_loss_forward.1} parent=43 // pred_check
        %p531 = pneg %p105
      $region46: #{mcr_gan_loss_forward.1} parent=43 // pred_check_branch
        %533 = sbr.rel (%p531) target = $region48
      $region47: #{mcr_gan_loss_forward.1} parent=43 // pred_region
        %p534 = scmp.lt.s32.totalorder %s19, 1
        %s535 = scalar_select %p534, %s19, 1
        %s536 = smul.addr %s535, 8
        %s537 = smul.addr %s536, 8
        %s538 = scalar_lea.vmem %s2, %s537
      $region48: #{mcr_gan_loss_forward.1} parent=43 // pred_fallthru
        _
    $region44: #{mcr_gan_loss_forward.1} parent=5 // pred_fallthru
      _
  $region6: #{mcr_gan_loss_forward.1} parent=0 // loop_footer
    %s12 = sadd.s32 1, %s8
  $region7: #{mcr_gan_loss_forward.1} parent=0 // loop_footer_branch
    %7 = sbr.rel target = $region3
  $region8: #{mcr_gan_loss_forward.1} parent=0 // loop_exit
    _

</llo_original>
